<compile_context>
chip_gen: v5e
topology: v5e:2x2
jax: 0.10.0
libtpu: 0.0.40
codegen_flags: <defaults>
</compile_context>

<pallas_src>
import jax
import jax.numpy as jnp
from jax.experimental import pallas as pl
from jax.experimental.pallas import tpu as pltpu


def _round_up(v, m):
    return ((v + m - 1) // m) * m


def _custom_clip_kernel(params_ref, x_ref, w1_ref, w2_ref, t_ref, o_ref, feat_ref):
    """One (batch-tile, class-tile) grid step.

    params_ref: SMEM (2,) f32 -> [exp(logit_scale)*alpha, exp(logit_scale)*(1-alpha)]
    x_ref:   (TB, c_in)      image-feature tile
    w1_ref:  (c_in, hidden)  adapter W1, pre-transposed (resident)
    w2_ref:  (hidden, c_in)  adapter W2, pre-transposed (resident)
    t_ref:   (c_in, TN)      text-feature class tile
    o_ref:   (TB, TN)        logits tile
    feat_ref: VMEM scratch (TB, c_in) f32 — scaled blended features, reused
              across all class tiles of the same batch tile.
    """
    @pl.when(pl.program_id(1) == 0)
    def _():
        sa = params_ref[0]      # exp(logit_scale) * alpha
        sb = params_ref[1]      # exp(logit_scale) * (1 - alpha)
        x = x_ref[...]
        # Adapter MLP: f32 accumulation on the MXU, ReLU on the VPU in f32.
        h = jnp.dot(x, w1_ref[...], preferred_element_type=jnp.float32)
        h = jnp.maximum(h, 0.0)
        a = jnp.dot(h.astype(w2_ref.dtype), w2_ref[...],
                    preferred_element_type=jnp.float32)
        a = jnp.maximum(a, 0.0)
        # Residual blend with the logit scale already folded in.
        feat_ref[...] = sa * a + sb * x.astype(jnp.float32)

    # logits tile = feat @ text_tile  (scale already applied to feat).
    o_ref[...] = jnp.dot(feat_ref[...].astype(t_ref.dtype), t_ref[...],
                         preferred_element_type=jnp.float32).astype(o_ref.dtype)


def custom_clip_forward(image_features, text_features, w1_t, w2_t,
                        alpha, logit_scale, *,
                        block_b=256, block_n=2048,
                        compute_dtype=jnp.bfloat16, out_dtype=None,
                        single_buffer_resident=True, two_core_split=True):
    """CustomCLIP forward.

    image_features: (B, c_in)
    text_features:  (c_in, n_cls)
    w1_t: (c_in, hidden)  -- PyTorch fc[0].weight.T, pre-transposed ONCE offline
    w2_t: (hidden, c_in)  -- PyTorch fc[2].weight.T, pre-transposed ONCE offline
    alpha, logit_scale: scalars (logit_scale is the raw parameter; exp() is
                        applied here, matching the PyTorch forward).
    compute_dtype: bf16 by default (halves HBM / VMEM traffic, ~2x MXU);
                   accumulation and the ReLU/blend math stay f32.
                   Pass jnp.float32 for full-precision I/O.
    block_b: batch-tile target (256 fills the v6e/v7x MXU; multiple of 128 for v5e).
    block_n: class-tile target (class axis streams when padded n_cls > block_n).
    """
    B, c_in = image_features.shape
    hidden = w1_t.shape[1]
    n_cls = text_features.shape[1]
    assert w1_t.shape == (c_in, hidden)
    assert w2_t.shape == (hidden, c_in)
    assert text_features.shape[0] == c_in

    if out_dtype is None:
        out_dtype = image_features.dtype
    if compute_dtype is None:
        compute_dtype = image_features.dtype

    x = image_features.astype(compute_dtype)
    w1_t = w1_t.astype(compute_dtype)
    w2_t = w2_t.astype(compute_dtype)
    t = text_features.astype(compute_dtype)

    itemsize = jnp.dtype(compute_dtype).itemsize
    out_itemsize = jnp.dtype(out_dtype).itemsize

    # ---- class axis: pad to a lane-dense width (multiple of 128) -----------
    n_pad = _round_up(n_cls, 128)
    if n_pad != n_cls:
        t = jnp.pad(t, ((0, 0), (0, n_pad - n_cls)))
    tn = min(n_pad, _round_up(block_n, 128))
    nj = pl.cdiv(n_pad, tn)

    # ---- batch axis: sublane-pack aligned tiles for the compute dtype ------
    pack = max(8, 32 // itemsize)           # 8 rows f32, 16 bf16, 32 int8/fp8
    tb = min(block_b, B)
    if two_core_split and tb >= B and B >= 2 * pack:
        # Ensure >= 2 grid steps so both v7x TensorCores get work.
        tb = (B + 1) // 2
    if tb < B:
        tb = min(_round_up(max(tb, pack), pack), B)
    nb = pl.cdiv(B, tb)

    # ---- scalars via SMEM scalar prefetch, scale folded into the blend -----
    scale = jnp.exp(jnp.asarray(logit_scale, jnp.float32))
    a_f = jnp.asarray(alpha, jnp.float32)
    params = jnp.stack([scale * a_f, scale * (1.0 - a_f)])

    # ---- advisory cost estimate (padded shapes) -----------------------------
    cost = pl.CostEstimate(
        flops=(2 * B * c_in * hidden * 2        # two adapter matmuls
               + 2 * B * c_in * n_pad           # logits matmul (padded)
               + B * (hidden + c_in)            # ReLUs
               + 3 * B * c_in),                 # residual blend
        transcendentals=0,
        bytes_accessed=(itemsize * (B * c_in + 2 * c_in * hidden + c_in * n_pad)
                        + out_itemsize * B * n_pad),
    )

    # ---- VMEM budget (double-buffered streams + resident weights + scratch) -
    resident_bufs = 1 if single_buffer_resident else 2
    text_bufs = resident_bufs if nj == 1 else 2
    work = (2 * tb * c_in * itemsize
            + resident_bufs * 2 * c_in * hidden * itemsize
            + text_bufs * c_in * tn * itemsize
            + 2 * tb * tn * out_itemsize
            + tb * c_in * 4)
    vmem_limit = int(min(48 * 1024 * 1024, max(2 * work, 16 * 1024 * 1024)))

    def _call(resident_mode):
        res_kw = {} if resident_mode is None else {"pipeline_mode": resident_mode}
        txt_kw = res_kw if nj == 1 else {}      # text streams when class-tiled
        grid_spec = pltpu.PrefetchScalarGridSpec(
            num_scalar_prefetch=1,
            grid=(nb, nj),
            in_specs=[
                pl.BlockSpec((tb, c_in), lambda i, j, p: (i, 0)),           # x tile
                pl.BlockSpec((c_in, hidden), lambda i, j, p: (0, 0), **res_kw),  # W1^T
                pl.BlockSpec((hidden, c_in), lambda i, j, p: (0, 0), **res_kw),  # W2^T
                pl.BlockSpec((c_in, tn), lambda i, j, p: (0, j), **txt_kw),       # text
            ],
            out_specs=pl.BlockSpec((tb, tn), lambda i, j, p: (i, j)),
            scratch_shapes=[pltpu.VMEM((tb, c_in), jnp.float32)],
        )
        return pl.pallas_call(
            _custom_clip_kernel,
            out_shape=jax.ShapeDtypeStruct((B, n_pad), out_dtype),
            grid_spec=grid_spec,
            compiler_params=pltpu.CompilerParams(
                dimension_semantics=("parallel", "arbitrary"),
                vmem_limit_bytes=vmem_limit),
            cost_estimate=cost,
        )(params, x, w1_t, w2_t, t)

    if single_buffer_resident:
        try:
            out = _call(pl.Buffered(1))
        except Exception:
            # pipeline_mode / single-buffering unsupported in this jax build:
            # fall back to default (double-buffered) resident blocks.
            out = _call(None)
    else:
        out = _call(None)

    return out[:, :n_cls] if n_pad != n_cls else out


def reference_forward(image_features, text_features, w1, w2, alpha, logit_scale):
    """Pure-JAX reference matching the PyTorch CustomCLIP.forward (f32)."""
    a = jnp.maximum(image_features @ w1.T, 0.0)
    a = jnp.maximum(a @ w2.T, 0.0)
    feat = alpha * a + (1.0 - alpha) * image_features
    return jnp.exp(logit_scale) * (feat @ text_features)


if __name__ == "__main__":
    key = jax.random.PRNGKey(0)
    # Shapes fixed by the module: Adapter(512, 4) -> c_in=512, hidden=128.
    B, c_in, reduction = 16, 512, 4
    hidden = c_in // reduction
    n_cls = 100                         # deliberately NOT a multiple of 128
    alpha = 0.2
    logit_scale = jnp.float32(2.6592)   # ln(1/0.07), standard CLIP init

    kx, kt, k1, k2 = jax.random.split(key, 4)
    image_features = jax.random.normal(kx, (B, c_in), dtype=jnp.float32)
    text_features = (jax.random.normal(kt, (c_in, n_cls), dtype=jnp.float32)
                     / jnp.sqrt(jnp.float32(c_in)))
    # PyTorch nn.Linear layout is (out_features, in_features).
    w1 = jax.random.normal(k1, (hidden, c_in), dtype=jnp.float32) / jnp.sqrt(jnp.float32(c_in))
    w2 = jax.random.normal(k2, (c_in, hidden), dtype=jnp.float32) / jnp.sqrt(jnp.float32(hidden))

    # One-time weight transpose, OUTSIDE the hot path.
    w1_t = jnp.asarray(w1.T)            # (c_in, hidden)
    w2_t = jnp.asarray(w2.T)            # (hidden, c_in)

    ref = reference_forward(image_features, text_features, w1, w2, alpha, logit_scale)

    # f32 path, small batch tiles -> exercises batch pipelining + n_cls padding.
    out_f32 = custom_clip_forward(image_features, text_features, w1_t, w2_t,
                                  alpha, logit_scale,
                                  block_b=8, compute_dtype=jnp.float32)
    out_f32 = jax.block_until_ready(out_f32)
    assert out_f32.shape == (B, n_cls)
    rel = jnp.max(jnp.abs(out_f32 - ref)) / (jnp.max(jnp.abs(ref)) + 1e-6)
    assert rel < 1e-3, f"f32 mismatch vs reference: rel={rel}"

    # Default bf16 I/O path with class-axis tiling (block_n < padded n_cls):
    # exercises the feat-scratch reuse across class tiles, the clipped last
    # class tile, and multi-step batch pipelining.
    B2, n_cls2 = 64, 300
    kx2, kt2 = jax.random.split(jax.random.PRNGKey(1))
    x2 = jax.random.normal(kx2, (B2, c_in), dtype=jnp.float32)
    t2 = (jax.random.normal(kt2, (c_in, n_cls2), dtype=jnp.float32)
          / jnp.sqrt(jnp.float32(c_in)))
    ref2 = reference_forward(x2, t2, w1, w2, alpha, logit_scale)
    out_bf16 = custom_clip_forward(x2, t2, w1_t, w2_t, alpha, logit_scale,
                                   block_b=16, block_n=256,
                                   out_dtype=jnp.float32)
    out_bf16 = jax.block_until_ready(out_bf16)
    assert out_bf16.shape == (B2, n_cls2)
    rel2 = jnp.max(jnp.abs(out_bf16 - ref2)) / (jnp.max(jnp.abs(ref2)) + 1e-6)
    assert rel2 < 3e-2, f"bf16 path relative error too large: {rel2}"

    print("KERNEL_OK")
</pallas_src>

<mosaic_0001>
module attributes {stable_mosaic.version = 11 : i64} {
  func.func @_custom_clip_kernel(%arg0: i32, %arg1: i32, %arg2: memref<2xf32, #tpu.memory_space<smem>>, %arg3: memref<8x512xf32, #tpu.memory_space<vmem>>, %arg4: memref<512x128xf32, #tpu.memory_space<vmem>>, %arg5: memref<128x512xf32, #tpu.memory_space<vmem>>, %arg6: memref<512x128xf32, #tpu.memory_space<vmem>>, %arg7: memref<8x128xf32, #tpu.memory_space<vmem>>, %arg8: memref<8x512xf32, #tpu.memory_space<vmem>>) attributes {dimension_semantics = [#tpu.dimension_semantics<parallel>, #tpu.dimension_semantics<arbitrary>], iteration_bounds = array<i64: 2, 1>, scalar_prefetch = 1 : i64, scratch_operands = 1 : i64, tpu.core_type = #tpu.core_type<tc>, window_params = [{transform_indices = @transform_0, window_bounds = array<i64: 8, 512>}, {pipeline_mode = #tpu.pipeline_mode<synchronous>, transform_indices = @transform_1, window_bounds = array<i64: 512, 128>}, {pipeline_mode = #tpu.pipeline_mode<synchronous>, transform_indices = @transform_2, window_bounds = array<i64: 128, 512>}, {pipeline_mode = #tpu.pipeline_mode<synchronous>, transform_indices = @transform_3, window_bounds = array<i64: 512, 128>}, {transform_indices = @transform_4, window_bounds = array<i64: 8, 128>}]} {
    %c0_i32 = arith.constant 0 : i32
    %0 = arith.cmpi eq, %arg1, %c0_i32 : i32
    %1 = arith.extui %0 : i1 to i32
    %c0_i32_0 = arith.constant 0 : i32
    %2 = arith.cmpi ne, %1, %c0_i32_0 : i32
    scf.if %2 {
      %c0_6 = arith.constant 0 : index
      %7 = memref.load %arg2[%c0_6] : memref<2xf32, #tpu.memory_space<smem>>
      %c1 = arith.constant 1 : index
      %8 = memref.load %arg2[%c1] : memref<2xf32, #tpu.memory_space<smem>>
      %c0_7 = arith.constant 0 : index
      %c0_8 = arith.constant 0 : index
      %9 = vector.load %arg3[%c0_7, %c0_8] : memref<8x512xf32, #tpu.memory_space<vmem>>, vector<8x512xf32>
      %c0_9 = arith.constant 0 : index
      %c0_10 = arith.constant 0 : index
      %10 = vector.load %arg4[%c0_9, %c0_10] : memref<512x128xf32, #tpu.memory_space<vmem>>, vector<512x128xf32>
      %cst_11 = arith.constant dense<0.000000e+00> : vector<8x128xf32>
      %11 = tpu.matmul %9, %10, %cst_11 {dimension_numbers = #tpu.dot_dimension_numbers<[1], [0], [0], [1], [0, 0, 1, 1], [], []>} : vector<8x512xf32>, vector<512x128xf32>, vector<8x128xf32> -> vector<8x128xf32>
      %cst_12 = arith.constant 0.000000e+00 : f32
      %12 = vector.broadcast %cst_12 : f32 to vector<8x128xf32>
      %13 = arith.maximumf %11, %12 : vector<8x128xf32>
      %c0_13 = arith.constant 0 : index
      %c0_14 = arith.constant 0 : index
      %14 = vector.load %arg5[%c0_13, %c0_14] : memref<128x512xf32, #tpu.memory_space<vmem>>, vector<128x512xf32>
      %cst_15 = arith.constant dense<0.000000e+00> : vector<8x512xf32>
      %15 = tpu.matmul %13, %14, %cst_15 {dimension_numbers = #tpu.dot_dimension_numbers<[1], [0], [0], [1], [0, 0, 1, 1], [], []>} : vector<8x128xf32>, vector<128x512xf32>, vector<8x512xf32> -> vector<8x512xf32>
      %cst_16 = arith.constant 0.000000e+00 : f32
      %16 = vector.broadcast %cst_16 : f32 to vector<8x512xf32>
      %17 = arith.maximumf %15, %16 : vector<8x512xf32>
      %18 = vector.broadcast %7 : f32 to vector<8x512xf32>
      %19 = arith.mulf %18, %17 : vector<8x512xf32>
      %20 = vector.broadcast %8 : f32 to vector<8x512xf32>
      %21 = arith.mulf %20, %9 : vector<8x512xf32>
      %22 = arith.addf %19, %21 : vector<8x512xf32>
      %c0_17 = arith.constant 0 : index
      %c0_18 = arith.constant 0 : index
      %23 = vector.load %arg8[%c0_17, %c0_18] : memref<8x512xf32, #tpu.memory_space<vmem>>, vector<8x512xf32>
      tpu.vector_store %arg8[%c0_17, %c0_18], %22 {strides = array<i32>} : memref<8x512xf32, #tpu.memory_space<vmem>>, vector<8x512xf32>,
    } else {
    }
    %c0 = arith.constant 0 : index
    %c0_1 = arith.constant 0 : index
    %3 = vector.load %arg8[%c0, %c0_1] : memref<8x512xf32, #tpu.memory_space<vmem>>, vector<8x512xf32>
    %c0_2 = arith.constant 0 : index
    %c0_3 = arith.constant 0 : index
    %4 = vector.load %arg6[%c0_2, %c0_3] : memref<512x128xf32, #tpu.memory_space<vmem>>, vector<512x128xf32>
    %cst = arith.constant dense<0.000000e+00> : vector<8x128xf32>
    %5 = tpu.matmul %3, %4, %cst {dimension_numbers = #tpu.dot_dimension_numbers<[1], [0], [0], [1], [0, 0, 1, 1], [], []>} : vector<8x512xf32>, vector<512x128xf32>, vector<8x128xf32> -> vector<8x128xf32>
    %c0_4 = arith.constant 0 : index
    %c0_5 = arith.constant 0 : index
    %6 = vector.load %arg7[%c0_4, %c0_5] : memref<8x128xf32, #tpu.memory_space<vmem>>, vector<8x128xf32>
    tpu.vector_store %arg7[%c0_4, %c0_5], %5 {strides = array<i32>} : memref<8x128xf32, #tpu.memory_space<vmem>>, vector<8x128xf32>,
    return
  }
  func.func @transform_0(%arg0: i32, %arg1: i32, %arg2: memref<2xf32, #tpu.memory_space<smem>>) -> (i32, i32) {
    %c0_i32 = arith.constant 0 : i32
    %c0_i32_0 = arith.constant 0 : i32
    return %arg0, %c0_i32 : i32, i32
  }
  func.func @transform_1(%arg0: i32, %arg1: i32, %arg2: memref<2xf32, #tpu.memory_space<smem>>) -> (i32, i32) {
    %c0_i32 = arith.constant 0 : i32
    %c0_i32_0 = arith.constant 0 : i32
    %c0_i32_1 = arith.constant 0 : i32
    return %c0_i32, %c0_i32_0 : i32, i32
  }
  func.func @transform_2(%arg0: i32, %arg1: i32, %arg2: memref<2xf32, #tpu.memory_space<smem>>) -> (i32, i32) {
    %c0_i32 = arith.constant 0 : i32
    %c0_i32_0 = arith.constant 0 : i32
    %c0_i32_1 = arith.constant 0 : i32
    return %c0_i32, %c0_i32_0 : i32, i32
  }
  func.func @transform_3(%arg0: i32, %arg1: i32, %arg2: memref<2xf32, #tpu.memory_space<smem>>) -> (i32, i32) {
    %c0_i32 = arith.constant 0 : i32
    %c0_i32_0 = arith.constant 0 : i32
    return %c0_i32, %arg1 : i32, i32
  }
  func.func @transform_4(%arg0: i32, %arg1: i32, %arg2: memref<2xf32, #tpu.memory_space<smem>>) -> (i32, i32) {
    %c0_i32 = arith.constant 0 : i32
    return %arg0, %arg1 : i32, i32
  }
}

module attributes {stable_mosaic.version = 11 : i64} {
  func.func @_custom_clip_kernel(%arg0: i32, %arg1: i32, %arg2: memref<2xf32, #tpu.memory_space<smem>>, %arg3: memref<8x512xf32, #tpu.memory_space<vmem>>, %arg4: memref<512x128xf32, #tpu.memory_space<vmem>>, %arg5: memref<128x512xf32, #tpu.memory_space<vmem>>, %arg6: memref<512x128xf32, #tpu.memory_space<vmem>>, %arg7: memref<8x128xf32, #tpu.memory_space<vmem>>, %arg8: memref<8x512xf32, #tpu.memory_space<vmem>>) attributes {dimension_semantics = [#tpu.dimension_semantics<parallel>, #tpu.dimension_semantics<arbitrary>], iteration_bounds = array<i64: 2, 1>, scalar_prefetch = 1 : i64, scratch_operands = 1 : i64, tpu.core_type = #tpu.core_type<tc>, window_params = [{transform_indices = @transform_0, window_bounds = array<i64: 8, 512>}, {pipeline_mode = #tpu.pipeline_mode<synchronous>, transform_indices = @transform_1, window_bounds = array<i64: 512, 128>}, {pipeline_mode = #tpu.pipeline_mode<synchronous>, transform_indices = @transform_2, window_bounds = array<i64: 128, 512>}, {transform_indices = @transform_3, window_bounds = array<i64: 512, 128>}, {transform_indices = @transform_4, window_bounds = array<i64: 8, 128>}]} {
    %c0_i32 = arith.constant 0 : i32
    %0 = arith.cmpi eq, %arg1, %c0_i32 : i32
    %1 = arith.extui %0 : i1 to i32
    %c0_i32_0 = arith.constant 0 : i32
    %2 = arith.cmpi ne, %1, %c0_i32_0 : i32
    scf.if %2 {
      %c0_6 = arith.constant 0 : index
      %7 = memref.load %arg2[%c0_6] : memref<2xf32, #tpu.memory_space<smem>>
      %c1 = arith.constant 1 : index
      %8 = memref.load %arg2[%c1] : memref<2xf32, #tpu.memory_space<smem>>
      %c0_7 = arith.constant 0 : index
      %c0_8 = arith.constant 0 : index
      %9 = vector.load %arg3[%c0_7, %c0_8] : memref<8x512xf32, #tpu.memory_space<vmem>>, vector<8x512xf32>
      %c0_9 = arith.constant 0 : index
      %c0_10 = arith.constant 0 : index
      %10 = vector.load %arg4[%c0_9, %c0_10] : memref<512x128xf32, #tpu.memory_space<vmem>>, vector<512x128xf32>
      %cst_11 = arith.constant dense<0.000000e+00> : vector<8x128xf32>
      %11 = tpu.matmul %9, %10, %cst_11 {dimension_numbers = #tpu.dot_dimension_numbers<[1], [0], [0], [1], [0, 0, 1, 1], [], []>} : vector<8x512xf32>, vector<512x128xf32>, vector<8x128xf32> -> vector<8x128xf32>
      %cst_12 = arith.constant 0.000000e+00 : f32
      %12 = vector.broadcast %cst_12 : f32 to vector<8x128xf32>
      %13 = arith.maximumf %11, %12 : vector<8x128xf32>
      %c0_13 = arith.constant 0 : index
      %c0_14 = arith.constant 0 : index
      %14 = vector.load %arg5[%c0_13, %c0_14] : memref<128x512xf32, #tpu.memory_space<vmem>>, vector<128x512xf32>
      %cst_15 = arith.constant dense<0.000000e+00> : vector<8x512xf32>
      %15 = tpu.matmul %13, %14, %cst_15 {dimension_numbers = #tpu.dot_dimension_numbers<[1], [0], [0], [1], [0, 0, 1, 1], [], []>} : vector<8x128xf32>, vector<128x512xf32>, vector<8x512xf32> -> vector<8x512xf32>
      %cst_16 = arith.constant 0.000000e+00 : f32
      %16 = vector.broadcast %cst_16 : f32 to vector<8x512xf32>
      %17 = arith.maximumf %15, %16 : vector<8x512xf32>
      %18 = vector.broadcast %7 : f32 to vector<8x512xf32>
      %19 = arith.mulf %18, %17 : vector<8x512xf32>
      %20 = vector.broadcast %8 : f32 to vector<8x512xf32>
      %21 = arith.mulf %20, %9 : vector<8x512xf32>
      %22 = arith.addf %19, %21 : vector<8x512xf32>
      %c0_17 = arith.constant 0 : index
      %c0_18 = arith.constant 0 : index
      %23 = vector.load %arg8[%c0_17, %c0_18] : memref<8x512xf32, #tpu.memory_space<vmem>>, vector<8x512xf32>
      tpu.vector_store %arg8[%c0_17, %c0_18], %22 {strides = array<i32>} : memref<8x512xf32, #tpu.memory_space<vmem>>, vector<8x512xf32>,
    } else {
    }
    %c0 = arith.constant 0 : index
    %c0_1 = arith.constant 0 : index
    %3 = vector.load %arg8[%c0, %c0_1] : memref<8x512xf32, #tpu.memory_space<vmem>>, vector<8x512xf32>
    %c0_2 = arith.constant 0 : index
    %c0_3 = arith.constant 0 : index
    %4 = vector.load %arg6[%c0_2, %c0_3] : memref<512x128xf32, #tpu.memory_space<vmem>>, vector<512x128xf32>
    %cst = arith.constant dense<0.000000e+00> : vector<8x128xf32>
    %5 = tpu.matmul %3, %4, %cst {dimension_numbers = #tpu.dot_dimension_numbers<[1], [0], [0], [1], [0, 0, 1, 1], [], []>} : vector<8x512xf32>, vector<512x128xf32>, vector<8x128xf32> -> vector<8x128xf32>
    %c0_4 = arith.constant 0 : index
    %c0_5 = arith.constant 0 : index
    %6 = vector.load %arg7[%c0_4, %c0_5] : memref<8x128xf32, #tpu.memory_space<vmem>>, vector<8x128xf32>
    tpu.vector_store %arg7[%c0_4, %c0_5], %5 {strides = array<i32>} : memref<8x128xf32, #tpu.memory_space<vmem>>, vector<8x128xf32>,
    return
  }
  func.func @transform_0(%arg0: i32, %arg1: i32, %arg2: memref<2xf32, #tpu.memory_space<smem>>) -> (i32, i32) {
    %c0_i32 = arith.constant 0 : i32
    %c0_i32_0 = arith.constant 0 : i32
    return %arg0, %c0_i32 : i32, i32
  }
  func.func @transform_1(%arg0: i32, %arg1: i32, %arg2: memref<2xf32, #tpu.memory_space<smem>>) -> (i32, i32) {
    %c0_i32 = arith.constant 0 : i32
    %c0_i32_0 = arith.constant 0 : i32
    %c0_i32_1 = arith.constant 0 : i32
    return %c0_i32, %c0_i32_0 : i32, i32
  }
  func.func @transform_2(%arg0: i32, %arg1: i32, %arg2: memref<2xf32, #tpu.memory_space<smem>>) -> (i32, i32) {
    %c0_i32 = arith.constant 0 : i32
    %c0_i32_0 = arith.constant 0 : i32
    %c0_i32_1 = arith.constant 0 : i32
    return %c0_i32, %c0_i32_0 : i32, i32
  }
  func.func @transform_3(%arg0: i32, %arg1: i32, %arg2: memref<2xf32, #tpu.memory_space<smem>>) -> (i32, i32) {
    %c0_i32 = arith.constant 0 : i32
    %c0_i32_0 = arith.constant 0 : i32
    return %c0_i32, %arg1 : i32, i32
  }
  func.func @transform_4(%arg0: i32, %arg1: i32, %arg2: memref<2xf32, #tpu.memory_space<smem>>) -> (i32, i32) {
    %c0_i32 = arith.constant 0 : i32
    return %arg0, %arg1 : i32, i32
  }
}

</mosaic_0001>

<llo_original>
// kernel: tpu_custom_call.1
$region0: #{tpu_custom_call.1}
  #allocation0 [shape = 'u32[]', space=smem, size = 0x4, offset = 0x4, fixed_abs, tag = 'smem constant byte address 0x4 - core index']
  #allocation1 [shape = 'u32[72,128]{1,0:T(1,128)}', space=vmem, size = 0x9000, scoped, tag = 'internal scratch']
  #allocation2 [shape = 'f32[8,512]{1,0:T(8,128)}', space=vmem, size = 0x4000, scoped, tag = 'scratch operand']
  #allocation3 [shape = 's32[1]{0}', space=sflag, size = 0x4, scoped, tag = 'scoped memory for tpu_custom_call.1']
  #allocation4 [shape = 'u8[512]{0}', space=smem, size = 0x200, scoped, tag = 'prefetched SMEM operand 0']
  %s0 = inlined_call_operand.hbm [shape: f32[2], index: 0, kind: input, shape index: {}]
  %s1 = inlined_call_operand.hbm [shape: f32[16,512], index: 1, kind: input, shape index: {}]
  %s2 = inlined_call_operand.hbm [shape: f32[512,128], index: 2, kind: input, shape index: {}]
  %s3 = inlined_call_operand.hbm [shape: f32[128,512], index: 3, kind: input, shape index: {}]
  %s4 = inlined_call_operand.hbm [shape: f32[512,128], index: 4, kind: input, shape index: {}]
  %s5 = inlined_call_operand.hbm [shape: f32[16,128], index: 5, kind: output, shape index: {}]
  %s6 = sld [smem:[#allocation0]]
  $region69: #{tpu_custom_call.1} parent=0
    _
  %s8 = ssub.s32 1, %s6
  %s9 = scalar_select 0, %s8, %s6
  %s11 = sshll.u32 %s0, 4
  %s12 = int_to_ptr.hbm [resolvable:$true] %s11
  %14 = dma.hbm_to_smem %s12, 16, [#allocation4], [#allocation3]
  %16 = dma.done [#allocation3], 16
  %17 = sfence
  $region1: #{tpu_custom_call.1} parent=0
    #allocation5 [shape = 'u8[32768]{0}', space=vmem, size = 0x8000, scoped, tag = 'input window, operand 1']
    #allocation6 [shape = 's32[2]{0}', space=sflag, size = 0x8, scoped, tag = 'scoped memory for tpu_custom_call.1']
    #allocation7 [shape = 's32[2]{0}', space=sflag, size = 0x8, scoped, tag = 'scoped memory for tpu_custom_call.1']
    #allocation8 [shape = 'u8[262144]{0}', space=vmem, size = 0x40000, scoped, tag = 'input window, operand 2, single buffered']
    #allocation9 [shape = 's32[1]{0}', space=sflag, size = 0x4, scoped, tag = 'scoped memory for tpu_custom_call.1']
    #allocation10 [shape = 'u8[262144]{0}', space=vmem, size = 0x40000, scoped, tag = 'input window, operand 3, single buffered']
    #allocation11 [shape = 'u8[262144]{0}', space=vmem, size = 0x40000, scoped, tag = 'input window, operand 4, single buffered']
    #allocation12 [shape = 's32[1]{0}', space=sflag, size = 0x4, scoped, tag = 'scoped memory for tpu_custom_call.1']
    #allocation13 [shape = 'u8[8192]{0}', space=vmem, size = 0x2000, scoped, tag = 'output window, operand 0']
    %18 = vsyncpa [#allocation6], 0
    %s19 = scalar_lea.sflag [#allocation6], 1
    %20 = vsyncpa %s19, 0
    %21 = vsyncpa [#allocation9], 0
    %22 = vsyncpa [#allocation12], 0
    %23 = vsyncpa [#allocation7], 0
    %s24 = scalar_lea.sflag [#allocation7], 1
    %25 = vsyncpa %s24, 0
    loop: start=0, step=1, limit=4
    $region2: #{tpu_custom_call.1} parent=1 // loop_pre_header
      _
    $region3: #{tpu_custom_call.1} parent=1 // loop_header
      %s27 = sphi 0, %s31
      %p28 = scmp.ge.s32.totalorder %s27, 4
      %s34 = sphi 0, %s46
      %s35 = sphi 0, %s42
      %s36 = sphi 0, %s34
      %s37 = sphi 0, %s35
      %s38 = sphi 0, %s36
      %s39 = sphi 0, %s37
      %s49 = sphi 0, %s51
      %s52 = sphi 0, %s49
      %s53 = sphi 0, %s52
      %s69 = sphi 0, %s53
      %s73 = sphi 0, %s73
      %s75 = sphi 0, %s73
      %s76 = sphi 0, %s75
      %s90 = sphi 0, %s76
      %s94 = sphi 0, %s94
      %s96 = sphi 0, %s94
      %s97 = sphi 0, %s96
      %s111 = sphi 0, %s97
      %s117 = sphi 0, %s119
      %s120 = sphi 0, %s117
      %s121 = sphi 0, %s120
      %s137 = sphi 0, %s121
      %s145 = sphi 0, %s147
      %s148 = sphi 0, %s145
      %s149 = sphi 0, %s148
      %s165 = sphi 0, %s149
    $region4: #{tpu_custom_call.1} parent=1 // loop_header_branch
      %30 = sbr.rel (%p28) target = $region8
    $region5: #{tpu_custom_call.1} parent=1 // loop_body
      %s32 = ssub.s32 %s27, 1
      %s33 = ssub.s32 %s27, 2
      %s40 = sadd.s32 1, %s35
      %p41 = scmp.ge.s32.totalorder %s40, 1
      %s42 = scalar_select %p41, 0, %s40
      %s43 = sadd.s32 1, %s34
      %s44 = scalar_select %p41, %s43, %s34
      %p45 = scmp.ge.s32.totalorder %s44, 2
      %s46 = scalar_select %p45, 0, %s44
      %s47 = ssub.s32 %s34, %s46
      %p48 = scmp.eq.s32.totalorder %s47, 0
      %s50 = sadd.s32 %s49, 1
      %s51 = scalar_select %p48, %s49, %s50
      %p54 = pneg %p48
      %p55 = scmp.eq.s32.totalorder %s27, 1
      %p56 = por %p54, %p55
      %p57 = scmp.ne.s32.totalorder %s49, %s52
      %p58 = scmp.eq.s32.totalorder %s27, 0
      %p59 = por %p57, %p58
      %p60 = scmp.ne.s32.totalorder %s49, %s52
      %p61 = scmp.eq.s32.totalorder %s32, 1
      %p62 = por %p60, %p61
      %p63 = scmp.ne.s32.totalorder %s52, %s53
      %p64 = scmp.eq.s32.totalorder %s32, 0
      %p65 = por %p63, %p64
      %p66 = scmp.ne.s32.totalorder %s52, %s53
      %p67 = scmp.eq.s32.totalorder %s33, 1
      %p68 = por %p66, %p67
      %p70 = scmp.ne.s32.totalorder %s53, %s69
      %p71 = scmp.eq.s32.totalorder %s33, 0
      %p72 = por %p70, %p71
      %s74 = sadd.s32 %s73, 1
      %p77 = scmp.eq.s32.totalorder %s27, 1
      %p78 = scmp.ne.s32.totalorder %s73, %s75
      %p79 = scmp.eq.s32.totalorder %s27, 0
      %p80 = por %p78, %p79
      %p81 = scmp.ne.s32.totalorder %s73, %s75
      %p82 = scmp.eq.s32.totalorder %s32, 1
      %p83 = por %p81, %p82
      %p84 = scmp.ne.s32.totalorder %s75, %s76
      %p85 = scmp.eq.s32.totalorder %s32, 0
      %p86 = por %p84, %p85
      %p87 = scmp.ne.s32.totalorder %s75, %s76
      %p88 = scmp.eq.s32.totalorder %s33, 1
      %p89 = por %p87, %p88
      %p91 = scmp.ne.s32.totalorder %s76, %s90
      %p92 = scmp.eq.s32.totalorder %s33, 0
      %p93 = por %p91, %p92
      %s95 = sadd.s32 %s94, 1
      %p98 = scmp.eq.s32.totalorder %s27, 1
      %p99 = scmp.ne.s32.totalorder %s94, %s96
      %p100 = scmp.eq.s32.totalorder %s27, 0
      %p101 = por %p99, %p100
      %p102 = scmp.ne.s32.totalorder %s94, %s96
      %p103 = scmp.eq.s32.totalorder %s32, 1
      %p104 = por %p102, %p103
      %p105 = scmp.ne.s32.totalorder %s96, %s97
      %p106 = scmp.eq.s32.totalorder %s32, 0
      %p107 = por %p105, %p106
      %p108 = scmp.ne.s32.totalorder %s96, %s97
      %p109 = scmp.eq.s32.totalorder %s33, 1
      %p110 = por %p108, %p109
      %p112 = scmp.ne.s32.totalorder %s97, %s111
      %p113 = scmp.eq.s32.totalorder %s33, 0
      %p114 = por %p112, %p113
      %s115 = ssub.s32 %s35, %s42
      %p116 = scmp.eq.s32.totalorder %s115, 0
      %s118 = sadd.s32 %s117, 1
      %s119 = scalar_select %p116, %s117, %s118
      %p122 = pneg %p116
      %p123 = scmp.eq.s32.totalorder %s27, 1
      %p124 = por %p122, %p123
      %p125 = scmp.ne.s32.totalorder %s117, %s120
      %p126 = scmp.eq.s32.totalorder %s27, 0
      %p127 = por %p125, %p126
      %p128 = scmp.ne.s32.totalorder %s117, %s120
      %p129 = scmp.eq.s32.totalorder %s32, 1
      %p130 = por %p128, %p129
      %p131 = scmp.ne.s32.totalorder %s120, %s121
      %p132 = scmp.eq.s32.totalorder %s32, 0
      %p133 = por %p131, %p132
      %p134 = scmp.ne.s32.totalorder %s120, %s121
      %p135 = scmp.eq.s32.totalorder %s33, 1
      %p136 = por %p134, %p135
      %p138 = scmp.ne.s32.totalorder %s121, %s137
      %p139 = scmp.eq.s32.totalorder %s33, 0
      %p140 = por %p138, %p139
      %s141 = ssub.s32 %s34, %s46
      %s142 = ssub.s32 %s35, %s42
      %s143 = sor.u32 %s141, %s142
      %p144 = scmp.eq.s32.totalorder %s143, 0
      %s146 = sadd.s32 %s145, 1
      %s147 = scalar_select %p144, %s145, %s146
      %p150 = pneg %p144
      %p151 = scmp.eq.s32.totalorder %s27, 1
      %p152 = por %p150, %p151
      %p153 = scmp.ne.s32.totalorder %s145, %s148
      %p154 = scmp.eq.s32.totalorder %s27, 0
      %p155 = por %p153, %p154
      %p156 = scmp.ne.s32.totalorder %s145, %s148
      %p157 = scmp.eq.s32.totalorder %s32, 1
      %p158 = por %p156, %p157
      %p159 = scmp.ne.s32.totalorder %s148, %s149
      %p160 = scmp.eq.s32.totalorder %s32, 0
      %p161 = por %p159, %p160
      %p162 = scmp.ne.s32.totalorder %s148, %s149
      %p163 = scmp.eq.s32.totalorder %s33, 1
      %p164 = por %p162, %p163
      %p166 = scmp.ne.s32.totalorder %s149, %s165
      %p167 = scmp.eq.s32.totalorder %s33, 0
      %p168 = por %p166, %p167
      %p169 = scmp.le.s32.totalorder 1, %s27
      %p170 = scmp.lt.s32.totalorder %s27, 3
      %p171 = pnand %p169, %p170
      %p172 = pneg %p171
      // Predicated region
      $region9: #{tpu_custom_call.1} parent=5 // pred_check
        _
      $region10: #{tpu_custom_call.1} parent=5 // pred_check_branch
        %174 = sbr.rel (%p171) target = $region12
      $region11: #{tpu_custom_call.1} parent=5 // pred_region
        %s175 = ssub.s32 %s27, 1
        // Predicated region
        $region13: #{tpu_custom_call.1} parent=11 // pred_check
          %p176 = pneg %p86
        $region14: #{tpu_custom_call.1} parent=11 // pred_check_branch
          %178 = sbr.rel (%p176) target = $region16
        $region15: #{tpu_custom_call.1} parent=11 // pred_region
          %180 = vsyncadd [#allocation9], 0
          %s181 = sshll.u32 %s2, 4
          %s182 = int_to_ptr.hbm [resolvable:$true] %s181
          %s183 = sshll.u32 [#allocation8], 4
          %s184 = int_to_ptr.vmem [resolvable:$true] %s183
          %189 = dma.hbm_to_vmem [thread:$0]  %s182, 8192, %s184, [#allocation9], 128, 128, 8
        $region16: #{tpu_custom_call.1} parent=11 // pred_fallthru
          _
        // Predicated region
        $region17: #{tpu_custom_call.1} parent=11 // pred_check
          %p190 = pneg %p107
        $region18: #{tpu_custom_call.1} parent=11 // pred_check_branch
          %192 = sbr.rel (%p190) target = $region20
        $region19: #{tpu_custom_call.1} parent=11 // pred_region
          %194 = vsyncadd [#allocation9], 0
          %s195 = sshll.u32 %s3, 4
          %s196 = int_to_ptr.hbm [resolvable:$true] %s195
          %s197 = sshll.u32 [#allocation10], 4
          %s198 = int_to_ptr.vmem [resolvable:$true] %s197
          %203 = dma.hbm_to_vmem [thread:$0]  %s196, 8192, %s198, [#allocation9], 512, 512, 32
        $region20: #{tpu_custom_call.1} parent=11 // pred_fallthru
          _
        // Predicated region
        $region21: #{tpu_custom_call.1} parent=11 // pred_check
          %p204 = pneg %p133
        $region22: #{tpu_custom_call.1} parent=11 // pred_check_branch
          %206 = sbr.rel (%p204) target = $region24
        $region23: #{tpu_custom_call.1} parent=11 // pred_region
          %208 = vsyncadd [#allocation12], 0
          %s209 = smul.addr %s37, 8
          %s210 = scalar_lea.hbm %s4, %s209
          %s211 = sshll.u32 %s210, 4
          %s212 = int_to_ptr.hbm [resolvable:$true] %s211
          %s213 = sshll.u32 [#allocation11], 4
          %s214 = int_to_ptr.vmem [resolvable:$true] %s213
          %219 = dma.hbm_to_vmem [thread:$0]  %s212, 8192, %s214, [#allocation12], 128, 128, 8
        $region24: #{tpu_custom_call.1} parent=11 // pred_fallthru
          _
      $region12: #{tpu_custom_call.1} parent=5 // pred_fallthru
        _
      %p220 = scmp.lt.s32.totalorder %s27, 2
      // Predicated region
      $region25: #{tpu_custom_call.1} parent=5 // pred_check
        %p221 = pneg %p220
      $region26: #{tpu_custom_call.1} parent=5 // pred_check_branch
        %223 = sbr.rel (%p221) target = $region28
      $region27: #{tpu_custom_call.1} parent=5 // pred_region
        // Predicated region
        $region29: #{tpu_custom_call.1} parent=27 // pred_check
          %p224 = pneg %p59
        $region30: #{tpu_custom_call.1} parent=27 // pred_check_branch
          %226 = sbr.rel (%p224) target = $region32
        $region31: #{tpu_custom_call.1} parent=27 // pred_region
          %s227 = sand.u32 %s49, 1
          %s228 = scalar_lea.sflag [#allocation6], %s227
          %s229 = sand.u32 %s49, 1
          %s230 = smul.addr %s229, 32
          %s231 = scalar_lea.vmem [#allocation5], %s230
          %233 = vsyncadd %s228, 0
          %s234 = smul.addr %s34, 4
          %s235 = smul.addr %s234, 8
          %s236 = scalar_lea.hbm %s1, %s235
          %s238 = sshll.u32 %s236, 4
          %s239 = int_to_ptr.hbm [resolvable:$true] %s238
          %s240 = sshll.u32 %s231, 4
          %s241 = int_to_ptr.vmem [resolvable:$true] %s240
          %243 = dma.hbm_to_vmem [thread:$0]  %s239, 512, %s241, %s228
        $region32: #{tpu_custom_call.1} parent=27 // pred_fallthru
          _
      $region28: #{tpu_custom_call.1} parent=5 // pred_fallthru
        _
      %p244 = scmp.le.s32.totalorder 1, %s27
      %p245 = scmp.lt.s32.totalorder %s27, 3
      %p246 = pnand %p244, %p245
      %p247 = pneg %p246
      // Predicated region
      $region33: #{tpu_custom_call.1} parent=5 // pred_check
        _
      $region34: #{tpu_custom_call.1} parent=5 // pred_check_branch
        %249 = sbr.rel (%p246) target = $region36
      $region35: #{tpu_custom_call.1} parent=5 // pred_region
        %s250 = ssub.s32 %s27, 1
        %s251 = sand.u32 %s52, 1
        %s252 = scalar_lea.sflag [#allocation6], %s251
        %s253 = sand.u32 %s52, 1
        %s254 = smul.addr %s253, 32
        %s255 = scalar_lea.vmem [#allocation5], %s254
        // Predicated region
        $region37: #{tpu_custom_call.1} parent=35 // pred_check
          %p256 = pneg %p65
        $region38: #{tpu_custom_call.1} parent=35 // pred_check_branch
          %258 = sbr.rel (%p256) target = $region40
        $region39: #{tpu_custom_call.1} parent=35 // pred_region
          %260 = dma.done %s252, 512
        $region40: #{tpu_custom_call.1} parent=35 // pred_fallthru
          _
        // Predicated region
        $region41: #{tpu_custom_call.1} parent=35 // pred_check
          %p261 = pneg %p86
        $region42: #{tpu_custom_call.1} parent=35 // pred_check_branch
          %263 = sbr.rel (%p261) target = $region44
        $region43: #{tpu_custom_call.1} parent=35 // pred_region
          %265 = dma.done [#allocation9], 8192
        $region44: #{tpu_custom_call.1} parent=35 // pred_fallthru
          _
        // Predicated region
        $region45: #{tpu_custom_call.1} parent=35 // pred_check
          %p266 = pneg %p107
        $region46: #{tpu_custom_call.1} parent=35 // pred_check_branch
          %268 = sbr.rel (%p266) target = $region48
        $region47: #{tpu_custom_call.1} parent=35 // pred_region
          %270 = dma.done [#allocation9], 8192
        $region48: #{tpu_custom_call.1} parent=35 // pred_fallthru
          _
        // Predicated region
        $region49: #{tpu_custom_call.1} parent=35 // pred_check
          %p271 = pneg %p133
        $region50: #{tpu_custom_call.1} parent=35 // pred_check_branch
          %273 = sbr.rel (%p271) target = $region52
        $region51: #{tpu_custom_call.1} parent=35 // pred_region
          %275 = dma.done [#allocation12], 8192
        $region52: #{tpu_custom_call.1} parent=35 // pred_fallthru
          _
        %s276 = sand.u32 %s52, 1
        %s277 = scalar_lea.sflag [#allocation6], %s276
        %s278 = sand.u32 %s52, 1
        %s279 = smul.addr %s278, 32
        %s280 = scalar_lea.vmem [#allocation5], %s279
        %p281 = pneg %p65
        %p282 = pneg %p62
        %p283 = pneg %p86
        %p284 = pneg %p83
        %p285 = pneg %p107
        %p286 = pneg %p104
        %p287 = pneg %p133
        %p288 = pneg %p130
        %p289 = pneg %p161
        %p290 = pneg %p158
        %s291 = sand.u32 %s148, 1
        %s292 = scalar_lea.sflag [#allocation7], %s291
        %s293 = sand.u32 %s148, 1
        %s294 = smul.addr %s293, 8
        %s295 = scalar_lea.vmem [#allocation13], %s294
        %p296 = scmp.eq.s32.totalorder %s37, 0
        // Predicated region
        $region53: #{tpu_custom_call.1} parent=35 // pred_check
          %p297 = pneg %p296
        $region54: #{tpu_custom_call.1} parent=35 // pred_check_branch
          %299 = sbr.rel (%p297) target = $region56
        $region55: #{tpu_custom_call.1} parent=35 // pred_region
          %s300 = sld [smem:[#allocation4]]
          %s301 = sld [smem:[#allocation4 + $0x1]]
          %v302 = vld [vmem:[%s255] sm:$0xff]
          %v303 = vld [vmem:[%s255 + $0x8] sm:$0xff]
          %v304 = vld [vmem:[%s255 + $0x10] sm:$0xff]
          %v305 = vld [vmem:[%s255 + $0x18] sm:$0xff]
          %v306 = vld [vmem:[#allocation8] sm:$0xff]
          %v307 = vld [vmem:[#allocation8 + $0x8] sm:$0xff]
          %v308 = vld [vmem:[#allocation8 + $0x10] sm:$0xff]
          %v309 = vld [vmem:[#allocation8 + $0x18] sm:$0xff]
          %v310 = vld [vmem:[#allocation8 + $0x20] sm:$0xff]
          %v311 = vld [vmem:[#allocation8 + $0x28] sm:$0xff]
          %v312 = vld [vmem:[#allocation8 + $0x30] sm:$0xff]
          %v313 = vld [vmem:[#allocation8 + $0x38] sm:$0xff]
          %v314 = vld [vmem:[#allocation8 + $0x40] sm:$0xff]
          %v315 = vld [vmem:[#allocation8 + $0x48] sm:$0xff]
          %v316 = vld [vmem:[#allocation8 + $0x50] sm:$0xff]
          %v317 = vld [vmem:[#allocation8 + $0x58] sm:$0xff]
          %v318 = vld [vmem:[#allocation8 + $0x60] sm:$0xff]
          %v319 = vld [vmem:[#allocation8 + $0x68] sm:$0xff]
          %v320 = vld [vmem:[#allocation8 + $0x70] sm:$0xff]
          %v321 = vld [vmem:[#allocation8 + $0x78] sm:$0xff]
          %v322 = vld [vmem:[#allocation8 + $0x80] sm:$0xff]
          %v323 = vld [vmem:[#allocation8 + $0x88] sm:$0xff]
          %v324 = vld [vmem:[#allocation8 + $0x90] sm:$0xff]
          %v325 = vld [vmem:[#allocation8 + $0x98] sm:$0xff]
          %v326 = vld [vmem:[#allocation8 + $0xa0] sm:$0xff]
          %v327 = vld [vmem:[#allocation8 + $0xa8] sm:$0xff]
          %v328 = vld [vmem:[#allocation8 + $0xb0] sm:$0xff]
          %v329 = vld [vmem:[#allocation8 + $0xb8] sm:$0xff]
          %v330 = vld [vmem:[#allocation8 + $0xc0] sm:$0xff]
          %v331 = vld [vmem:[#allocation8 + $0xc8] sm:$0xff]
          %v332 = vld [vmem:[#allocation8 + $0xd0] sm:$0xff]
          %v333 = vld [vmem:[#allocation8 + $0xd8] sm:$0xff]
          %v334 = vld [vmem:[#allocation8 + $0xe0] sm:$0xff]
          %v335 = vld [vmem:[#allocation8 + $0xe8] sm:$0xff]
          %v336 = vld [vmem:[#allocation8 + $0xf0] sm:$0xff]
          %v337 = vld [vmem:[#allocation8 + $0xf8] sm:$0xff]
          %v338 = vld [vmem:[#allocation8 + $0x100] sm:$0xff]
          %v339 = vld [vmem:[#allocation8 + $0x108] sm:$0xff]
          %v340 = vld [vmem:[#allocation8 + $0x110] sm:$0xff]
          %v341 = vld [vmem:[#allocation8 + $0x118] sm:$0xff]
          %v342 = vld [vmem:[#allocation8 + $0x120] sm:$0xff]
          %v343 = vld [vmem:[#allocation8 + $0x128] sm:$0xff]
          %v344 = vld [vmem:[#allocation8 + $0x130] sm:$0xff]
          %v345 = vld [vmem:[#allocation8 + $0x138] sm:$0xff]
          %v346 = vld [vmem:[#allocation8 + $0x140] sm:$0xff]
          %v347 = vld [vmem:[#allocation8 + $0x148] sm:$0xff]
          %v348 = vld [vmem:[#allocation8 + $0x150] sm:$0xff]
          %v349 = vld [vmem:[#allocation8 + $0x158] sm:$0xff]
          %v350 = vld [vmem:[#allocation8 + $0x160] sm:$0xff]
          %v351 = vld [vmem:[#allocation8 + $0x168] sm:$0xff]
          %v352 = vld [vmem:[#allocation8 + $0x170] sm:$0xff]
          %v353 = vld [vmem:[#allocation8 + $0x178] sm:$0xff]
          %v354 = vld [vmem:[#allocation8 + $0x180] sm:$0xff]
          %v355 = vld [vmem:[#allocation8 + $0x188] sm:$0xff]
          %v356 = vld [vmem:[#allocation8 + $0x190] sm:$0xff]
          %v357 = vld [vmem:[#allocation8 + $0x198] sm:$0xff]
          %v358 = vld [vmem:[#allocation8 + $0x1a0] sm:$0xff]
          %v359 = vld [vmem:[#allocation8 + $0x1a8] sm:$0xff]
          %v360 = vld [vmem:[#allocation8 + $0x1b0] sm:$0xff]
          %v361 = vld [vmem:[#allocation8 + $0x1b8] sm:$0xff]
          %v362 = vld [vmem:[#allocation8 + $0x1c0] sm:$0xff]
          %v363 = vld [vmem:[#allocation8 + $0x1c8] sm:$0xff]
          %v364 = vld [vmem:[#allocation8 + $0x1d0] sm:$0xff]
          %v365 = vld [vmem:[#allocation8 + $0x1d8] sm:$0xff]
          %v366 = vld [vmem:[#allocation8 + $0x1e0] sm:$0xff]
          %v367 = vld [vmem:[#allocation8 + $0x1e8] sm:$0xff]
          %v368 = vld [vmem:[#allocation8 + $0x1f0] sm:$0xff]
          %v369 = vld [vmem:[#allocation8 + $0x1f8] sm:$0xff]
          %370 = vmatpush.msra.mxu0 %v321
          %371 = vmatpush.msra.mxu0 %v320
          %372 = vmatpush.msra.mxu0 %v319
          %373 = vmatpush.msra.mxu0 %v318
          %374 = vmatpush.msra.mxu0 %v317
          %375 = vmatpush.msra.mxu0 %v316
          %376 = vmatpush.msra.mxu0 %v315
          %377 = vmatpush.msra.mxu0 %v314
          %378 = vmatpush.msra.mxu0 %v313
          %379 = vmatpush.msra.mxu0 %v312
          %380 = vmatpush.msra.mxu0 %v311
          %381 = vmatpush.msra.mxu0 %v310
          %382 = vmatpush.msra.mxu0 %v309
          %383 = vmatpush.msra.mxu0 %v308
          %384 = vmatpush.msra.mxu0 %v307
          %385 = vmatpush.msra.mxu0 %v306
          %386 = vmatmul.f32.gmra.mxu0 %v302
          %v387 = vpop.f32.mrf.mxu0
          %v388 = vadd.f32 0.0, %v387
          %389 = vdwg.mxu0
          %390 = vmatpush.msra.mxu0 %v337
          %391 = vmatpush.msra.mxu0 %v336
          %392 = vmatpush.msra.mxu0 %v335
          %393 = vmatpush.msra.mxu0 %v334
          %394 = vmatpush.msra.mxu0 %v333
          %395 = vmatpush.msra.mxu0 %v332
          %396 = vmatpush.msra.mxu0 %v331
          %397 = vmatpush.msra.mxu0 %v330
          %398 = vmatpush.msra.mxu0 %v329
          %399 = vmatpush.msra.mxu0 %v328
          %400 = vmatpush.msra.mxu0 %v327
          %401 = vmatpush.msra.mxu0 %v326
          %402 = vmatpush.msra.mxu0 %v325
          %403 = vmatpush.msra.mxu0 %v324
          %404 = vmatpush.msra.mxu0 %v323
          %405 = vmatpush.msra.mxu0 %v322
          %406 = vmatmul.f32.gmra.mxu0 %v303
          %v407 = vpop.f32.mrf.mxu0
          %v408 = vadd.f32 %v388, %v407
          %409 = vdwg.mxu0
          %410 = vmatpush.msra.mxu0 %v353
          %411 = vmatpush.msra.mxu0 %v352
          %412 = vmatpush.msra.mxu0 %v351
          %413 = vmatpush.msra.mxu0 %v350
          %414 = vmatpush.msra.mxu0 %v349
          %415 = vmatpush.msra.mxu0 %v348
          %416 = vmatpush.msra.mxu0 %v347
          %417 = vmatpush.msra.mxu0 %v346
          %418 = vmatpush.msra.mxu0 %v345
          %419 = vmatpush.msra.mxu0 %v344
          %420 = vmatpush.msra.mxu0 %v343
          %421 = vmatpush.msra.mxu0 %v342
          %422 = vmatpush.msra.mxu0 %v341
          %423 = vmatpush.msra.mxu0 %v340
          %424 = vmatpush.msra.mxu0 %v339
          %425 = vmatpush.msra.mxu0 %v338
          %426 = vmatmul.f32.gmra.mxu0 %v304
          %v427 = vpop.f32.mrf.mxu0
          %v428 = vadd.f32 %v408, %v427
          %429 = vdwg.mxu0
          %430 = vmatpush.msra.mxu0 %v369
          %431 = vmatpush.msra.mxu0 %v368
          %432 = vmatpush.msra.mxu0 %v367
          %433 = vmatpush.msra.mxu0 %v366
          %434 = vmatpush.msra.mxu0 %v365
          %435 = vmatpush.msra.mxu0 %v364
          %436 = vmatpush.msra.mxu0 %v363
          %437 = vmatpush.msra.mxu0 %v362
          %438 = vmatpush.msra.mxu0 %v361
          %439 = vmatpush.msra.mxu0 %v360
          %440 = vmatpush.msra.mxu0 %v359
          %441 = vmatpush.msra.mxu0 %v358
          %442 = vmatpush.msra.mxu0 %v357
          %443 = vmatpush.msra.mxu0 %v356
          %444 = vmatpush.msra.mxu0 %v355
          %445 = vmatpush.msra.mxu0 %v354
          %446 = vmatmul.f32.gmra.mxu0 %v305
          %v447 = vpop.f32.mrf.mxu0
          %v448 = vadd.f32 %v428, %v447
          %449 = vdwg.mxu0
          %v450 = vmax.f32 %v448, 0.0
          %v451 = vld [vmem:[#allocation10] sm:$0xff]
          %v452 = vld [vmem:[#allocation10 + $0x8] sm:$0xff]
          %v453 = vld [vmem:[#allocation10 + $0x10] sm:$0xff]
          %v454 = vld [vmem:[#allocation10 + $0x18] sm:$0xff]
          %v455 = vld [vmem:[#allocation10 + $0x20] sm:$0xff]
          %v456 = vld [vmem:[#allocation10 + $0x28] sm:$0xff]
          %v457 = vld [vmem:[#allocation10 + $0x30] sm:$0xff]
          %v458 = vld [vmem:[#allocation10 + $0x38] sm:$0xff]
          %v459 = vld [vmem:[#allocation10 + $0x40] sm:$0xff]
          %v460 = vld [vmem:[#allocation10 + $0x48] sm:$0xff]
          %v461 = vld [vmem:[#allocation10 + $0x50] sm:$0xff]
          %v462 = vld [vmem:[#allocation10 + $0x58] sm:$0xff]
          %v463 = vld [vmem:[#allocation10 + $0x60] sm:$0xff]
          %v464 = vld [vmem:[#allocation10 + $0x68] sm:$0xff]
          %v465 = vld [vmem:[#allocation10 + $0x70] sm:$0xff]
          %v466 = vld [vmem:[#allocation10 + $0x78] sm:$0xff]
          %v467 = vld [vmem:[#allocation10 + $0x80] sm:$0xff]
          %v468 = vld [vmem:[#allocation10 + $0x88] sm:$0xff]
          %v469 = vld [vmem:[#allocation10 + $0x90] sm:$0xff]
          %v470 = vld [vmem:[#allocation10 + $0x98] sm:$0xff]
          %v471 = vld [vmem:[#allocation10 + $0xa0] sm:$0xff]
          %v472 = vld [vmem:[#allocation10 + $0xa8] sm:$0xff]
          %v473 = vld [vmem:[#allocation10 + $0xb0] sm:$0xff]
          %v474 = vld [vmem:[#allocation10 + $0xb8] sm:$0xff]
          %v475 = vld [vmem:[#allocation10 + $0xc0] sm:$0xff]
          %v476 = vld [vmem:[#allocation10 + $0xc8] sm:$0xff]
          %v477 = vld [vmem:[#allocation10 + $0xd0] sm:$0xff]
          %v478 = vld [vmem:[#allocation10 + $0xd8] sm:$0xff]
          %v479 = vld [vmem:[#allocation10 + $0xe0] sm:$0xff]
          %v480 = vld [vmem:[#allocation10 + $0xe8] sm:$0xff]
          %v481 = vld [vmem:[#allocation10 + $0xf0] sm:$0xff]
          %v482 = vld [vmem:[#allocation10 + $0xf8] sm:$0xff]
          %v483 = vld [vmem:[#allocation10 + $0x100] sm:$0xff]
          %v484 = vld [vmem:[#allocation10 + $0x108] sm:$0xff]
          %v485 = vld [vmem:[#allocation10 + $0x110] sm:$0xff]
          %v486 = vld [vmem:[#allocation10 + $0x118] sm:$0xff]
          %v487 = vld [vmem:[#allocation10 + $0x120] sm:$0xff]
          %v488 = vld [vmem:[#allocation10 + $0x128] sm:$0xff]
          %v489 = vld [vmem:[#allocation10 + $0x130] sm:$0xff]
          %v490 = vld [vmem:[#allocation10 + $0x138] sm:$0xff]
          %v491 = vld [vmem:[#allocation10 + $0x140] sm:$0xff]
          %v492 = vld [vmem:[#allocation10 + $0x148] sm:$0xff]
          %v493 = vld [vmem:[#allocation10 + $0x150] sm:$0xff]
          %v494 = vld [vmem:[#allocation10 + $0x158] sm:$0xff]
          %v495 = vld [vmem:[#allocation10 + $0x160] sm:$0xff]
          %v496 = vld [vmem:[#allocation10 + $0x168] sm:$0xff]
          %v497 = vld [vmem:[#allocation10 + $0x170] sm:$0xff]
          %v498 = vld [vmem:[#allocation10 + $0x178] sm:$0xff]
          %v499 = vld [vmem:[#allocation10 + $0x180] sm:$0xff]
          %v500 = vld [vmem:[#allocation10 + $0x188] sm:$0xff]
          %v501 = vld [vmem:[#allocation10 + $0x190] sm:$0xff]
          %v502 = vld [vmem:[#allocation10 + $0x198] sm:$0xff]
          %v503 = vld [vmem:[#allocation10 + $0x1a0] sm:$0xff]
          %v504 = vld [vmem:[#allocation10 + $0x1a8] sm:$0xff]
          %v505 = vld [vmem:[#allocation10 + $0x1b0] sm:$0xff]
          %v506 = vld [vmem:[#allocation10 + $0x1b8] sm:$0xff]
          %v507 = vld [vmem:[#allocation10 + $0x1c0] sm:$0xff]
          %v508 = vld [vmem:[#allocation10 + $0x1c8] sm:$0xff]
          %v509 = vld [vmem:[#allocation10 + $0x1d0] sm:$0xff]
          %v510 = vld [vmem:[#allocation10 + $0x1d8] sm:$0xff]
          %v511 = vld [vmem:[#allocation10 + $0x1e0] sm:$0xff]
          %v512 = vld [vmem:[#allocation10 + $0x1e8] sm:$0xff]
          %v513 = vld [vmem:[#allocation10 + $0x1f0] sm:$0xff]
          %v514 = vld [vmem:[#allocation10 + $0x1f8] sm:$0xff]
          %515 = vmatpush.msra.mxu0 %v511
          %516 = vmatpush.msra.mxu0 %v507
          %517 = vmatpush.msra.mxu0 %v503
          %518 = vmatpush.msra.mxu0 %v499
          %519 = vmatpush.msra.mxu0 %v495
          %520 = vmatpush.msra.mxu0 %v491
          %521 = vmatpush.msra.mxu0 %v487
          %522 = vmatpush.msra.mxu0 %v483
          %523 = vmatpush.msra.mxu0 %v479
          %524 = vmatpush.msra.mxu0 %v475
          %525 = vmatpush.msra.mxu0 %v471
          %526 = vmatpush.msra.mxu0 %v467
          %527 = vmatpush.msra.mxu0 %v463
          %528 = vmatpush.msra.mxu0 %v459
          %529 = vmatpush.msra.mxu0 %v455
          %530 = vmatpush.msra.mxu0 %v451
          %531 = vmatmul.f32.gmra.mxu0 %v450
          %v532 = vpop.f32.mrf.mxu0
          %v533 = vadd.f32 0.0, %v532
          %534 = vdwg.mxu0
          %535 = vmatpush.msra.mxu0 %v512
          %536 = vmatpush.msra.mxu0 %v508
          %537 = vmatpush.msra.mxu0 %v504
          %538 = vmatpush.msra.mxu0 %v500
          %539 = vmatpush.msra.mxu0 %v496
          %540 = vmatpush.msra.mxu0 %v492
          %541 = vmatpush.msra.mxu0 %v488
          %542 = vmatpush.msra.mxu0 %v484
          %543 = vmatpush.msra.mxu0 %v480
          %544 = vmatpush.msra.mxu0 %v476
          %545 = vmatpush.msra.mxu0 %v472
          %546 = vmatpush.msra.mxu0 %v468
          %547 = vmatpush.msra.mxu0 %v464
          %548 = vmatpush.msra.mxu0 %v460
          %549 = vmatpush.msra.mxu0 %v456
          %550 = vmatpush.msra.mxu0 %v452
          %551 = vmatmul.f32.gmra.mxu0 %v450
          %v552 = vpop.f32.mrf.mxu0
          %v553 = vadd.f32 0.0, %v552
          %554 = vdwg.mxu0
          %555 = vmatpush.msra.mxu0 %v513
          %556 = vmatpush.msra.mxu0 %v509
          %557 = vmatpush.msra.mxu0 %v505
          %558 = vmatpush.msra.mxu0 %v501
          %559 = vmatpush.msra.mxu0 %v497
          %560 = vmatpush.msra.mxu0 %v493
          %561 = vmatpush.msra.mxu0 %v489
          %562 = vmatpush.msra.mxu0 %v485
          %563 = vmatpush.msra.mxu0 %v481
          %564 = vmatpush.msra.mxu0 %v477
          %565 = vmatpush.msra.mxu0 %v473
          %566 = vmatpush.msra.mxu0 %v469
          %567 = vmatpush.msra.mxu0 %v465
          %568 = vmatpush.msra.mxu0 %v461
          %569 = vmatpush.msra.mxu0 %v457
          %570 = vmatpush.msra.mxu0 %v453
          %571 = vmatmul.f32.gmra.mxu0 %v450
          %v572 = vpop.f32.mrf.mxu0
          %v573 = vadd.f32 0.0, %v572
          %574 = vdwg.mxu0
          %575 = vmatpush.msra.mxu0 %v514
          %576 = vmatpush.msra.mxu0 %v510
          %577 = vmatpush.msra.mxu0 %v506
          %578 = vmatpush.msra.mxu0 %v502
          %579 = vmatpush.msra.mxu0 %v498
          %580 = vmatpush.msra.mxu0 %v494
          %581 = vmatpush.msra.mxu0 %v490
          %582 = vmatpush.msra.mxu0 %v486
          %583 = vmatpush.msra.mxu0 %v482
          %584 = vmatpush.msra.mxu0 %v478
          %585 = vmatpush.msra.mxu0 %v474
          %586 = vmatpush.msra.mxu0 %v470
          %587 = vmatpush.msra.mxu0 %v466
          %588 = vmatpush.msra.mxu0 %v462
          %589 = vmatpush.msra.mxu0 %v458
          %590 = vmatpush.msra.mxu0 %v454
          %591 = vmatmul.f32.gmra.mxu0 %v450
          %v592 = vpop.f32.mrf.mxu0
          %v593 = vadd.f32 0.0, %v592
          %594 = vdwg.mxu0
          %v595 = vmax.f32 %v533, 0.0
          %v596 = vmax.f32 %v553, 0.0
          %v597 = vmax.f32 %v573, 0.0
          %v598 = vmax.f32 %v593, 0.0
          %v599 = vstv %s300
          %v600 = vmul.f32 %v599, %v595
          %v601 = vmul.f32 %v599, %v596
          %v602 = vmul.f32 %v599, %v597
          %v603 = vmul.f32 %v599, %v598
          %v604 = vstv %s301
          %v605 = vmul.f32 %v604, %v302
          %v606 = vmul.f32 %v604, %v303
          %v607 = vmul.f32 %v604, %v304
          %v608 = vmul.f32 %v604, %v305
          %v609 = vadd.f32 %v600, %v605
          %v610 = vadd.f32 %v601, %v606
          %v611 = vadd.f32 %v602, %v607
          %v612 = vadd.f32 %v603, %v608
          %613 = vst [vmem:[#allocation2] sm:$0xff] %v609
          %614 = vst [vmem:[#allocation2 + $0x8] sm:$0xff] %v610
          %615 = vst [vmem:[#allocation2 + $0x10] sm:$0xff] %v611
          %616 = vst [vmem:[#allocation2 + $0x18] sm:$0xff] %v612
        $region56: #{tpu_custom_call.1} parent=35 // pred_fallthru
          _
        %v617 = vld [vmem:[#allocation2] sm:$0xff]
        %v618 = vld [vmem:[#allocation2 + $0x8] sm:$0xff]
        %v619 = vld [vmem:[#allocation2 + $0x10] sm:$0xff]
        %v620 = vld [vmem:[#allocation2 + $0x18] sm:$0xff]
        %v621 = vld [vmem:[#allocation11] sm:$0xff]
        %v622 = vld [vmem:[#allocation11 + $0x8] sm:$0xff]
        %v623 = vld [vmem:[#allocation11 + $0x10] sm:$0xff]
        %v624 = vld [vmem:[#allocation11 + $0x18] sm:$0xff]
        %v625 = vld [vmem:[#allocation11 + $0x20] sm:$0xff]
        %v626 = vld [vmem:[#allocation11 + $0x28] sm:$0xff]
        %v627 = vld [vmem:[#allocation11 + $0x30] sm:$0xff]
        %v628 = vld [vmem:[#allocation11 + $0x38] sm:$0xff]
        %v629 = vld [vmem:[#allocation11 + $0x40] sm:$0xff]
        %v630 = vld [vmem:[#allocation11 + $0x48] sm:$0xff]
        %v631 = vld [vmem:[#allocation11 + $0x50] sm:$0xff]
        %v632 = vld [vmem:[#allocation11 + $0x58] sm:$0xff]
        %v633 = vld [vmem:[#allocation11 + $0x60] sm:$0xff]
        %v634 = vld [vmem:[#allocation11 + $0x68] sm:$0xff]
        %v635 = vld [vmem:[#allocation11 + $0x70] sm:$0xff]
        %v636 = vld [vmem:[#allocation11 + $0x78] sm:$0xff]
        %v637 = vld [vmem:[#allocation11 + $0x80] sm:$0xff]
        %v638 = vld [vmem:[#allocation11 + $0x88] sm:$0xff]
        %v639 = vld [vmem:[#allocation11 + $0x90] sm:$0xff]
        %v640 = vld [vmem:[#allocation11 + $0x98] sm:$0xff]
        %v641 = vld [vmem:[#allocation11 + $0xa0] sm:$0xff]
        %v642 = vld [vmem:[#allocation11 + $0xa8] sm:$0xff]
        %v643 = vld [vmem:[#allocation11 + $0xb0] sm:$0xff]
        %v644 = vld [vmem:[#allocation11 + $0xb8] sm:$0xff]
        %v645 = vld [vmem:[#allocation11 + $0xc0] sm:$0xff]
        %v646 = vld [vmem:[#allocation11 + $0xc8] sm:$0xff]
        %v647 = vld [vmem:[#allocation11 + $0xd0] sm:$0xff]
        %v648 = vld [vmem:[#allocation11 + $0xd8] sm:$0xff]
        %v649 = vld [vmem:[#allocation11 + $0xe0] sm:$0xff]
        %v650 = vld [vmem:[#allocation11 + $0xe8] sm:$0xff]
        %v651 = vld [vmem:[#allocation11 + $0xf0] sm:$0xff]
        %v652 = vld [vmem:[#allocation11 + $0xf8] sm:$0xff]
        %v653 = vld [vmem:[#allocation11 + $0x100] sm:$0xff]
        %v654 = vld [vmem:[#allocation11 + $0x108] sm:$0xff]
        %v655 = vld [vmem:[#allocation11 + $0x110] sm:$0xff]
        %v656 = vld [vmem:[#allocation11 + $0x118] sm:$0xff]
        %v657 = vld [vmem:[#allocation11 + $0x120] sm:$0xff]
        %v658 = vld [vmem:[#allocation11 + $0x128] sm:$0xff]
        %v659 = vld [vmem:[#allocation11 + $0x130] sm:$0xff]
        %v660 = vld [vmem:[#allocation11 + $0x138] sm:$0xff]
        %v661 = vld [vmem:[#allocation11 + $0x140] sm:$0xff]
        %v662 = vld [vmem:[#allocation11 + $0x148] sm:$0xff]
        %v663 = vld [vmem:[#allocation11 + $0x150] sm:$0xff]
        %v664 = vld [vmem:[#allocation11 + $0x158] sm:$0xff]
        %v665 = vld [vmem:[#allocation11 + $0x160] sm:$0xff]
        %v666 = vld [vmem:[#allocation11 + $0x168] sm:$0xff]
        %v667 = vld [vmem:[#allocation11 + $0x170] sm:$0xff]
        %v668 = vld [vmem:[#allocation11 + $0x178] sm:$0xff]
        %v669 = vld [vmem:[#allocation11 + $0x180] sm:$0xff]
        %v670 = vld [vmem:[#allocation11 + $0x188] sm:$0xff]
        %v671 = vld [vmem:[#allocation11 + $0x190] sm:$0xff]
        %v672 = vld [vmem:[#allocation11 + $0x198] sm:$0xff]
        %v673 = vld [vmem:[#allocation11 + $0x1a0] sm:$0xff]
        %v674 = vld [vmem:[#allocation11 + $0x1a8] sm:$0xff]
        %v675 = vld [vmem:[#allocation11 + $0x1b0] sm:$0xff]
        %v676 = vld [vmem:[#allocation11 + $0x1b8] sm:$0xff]
        %v677 = vld [vmem:[#allocation11 + $0x1c0] sm:$0xff]
        %v678 = vld [vmem:[#allocation11 + $0x1c8] sm:$0xff]
        %v679 = vld [vmem:[#allocation11 + $0x1d0] sm:$0xff]
        %v680 = vld [vmem:[#allocation11 + $0x1d8] sm:$0xff]
        %v681 = vld [vmem:[#allocation11 + $0x1e0] sm:$0xff]
        %v682 = vld [vmem:[#allocation11 + $0x1e8] sm:$0xff]
        %v683 = vld [vmem:[#allocation11 + $0x1f0] sm:$0xff]
        %v684 = vld [vmem:[#allocation11 + $0x1f8] sm:$0xff]
        %685 = vmatpush.msra.mxu0 %v636
        %686 = vmatpush.msra.mxu0 %v635
        %687 = vmatpush.msra.mxu0 %v634
        %688 = vmatpush.msra.mxu0 %v633
        %689 = vmatpush.msra.mxu0 %v632
        %690 = vmatpush.msra.mxu0 %v631
        %691 = vmatpush.msra.mxu0 %v630
        %692 = vmatpush.msra.mxu0 %v629
        %693 = vmatpush.msra.mxu0 %v628
        %694 = vmatpush.msra.mxu0 %v627
        %695 = vmatpush.msra.mxu0 %v626
        %696 = vmatpush.msra.mxu0 %v625
        %697 = vmatpush.msra.mxu0 %v624
        %698 = vmatpush.msra.mxu0 %v623
        %699 = vmatpush.msra.mxu0 %v622
        %700 = vmatpush.msra.mxu0 %v621
        %701 = vmatmul.f32.gmra.mxu0 %v617
        %v702 = vpop.f32.mrf.mxu0
        %v703 = vadd.f32 0.0, %v702
        %704 = vdwg.mxu0
        %705 = vmatpush.msra.mxu0 %v652
        %706 = vmatpush.msra.mxu0 %v651
        %707 = vmatpush.msra.mxu0 %v650
        %708 = vmatpush.msra.mxu0 %v649
        %709 = vmatpush.msra.mxu0 %v648
        %710 = vmatpush.msra.mxu0 %v647
        %711 = vmatpush.msra.mxu0 %v646
        %712 = vmatpush.msra.mxu0 %v645
        %713 = vmatpush.msra.mxu0 %v644
        %714 = vmatpush.msra.mxu0 %v643
        %715 = vmatpush.msra.mxu0 %v642
        %716 = vmatpush.msra.mxu0 %v641
        %717 = vmatpush.msra.mxu0 %v640
        %718 = vmatpush.msra.mxu0 %v639
        %719 = vmatpush.msra.mxu0 %v638
        %720 = vmatpush.msra.mxu0 %v637
        %721 = vmatmul.f32.gmra.mxu0 %v618
        %v722 = vpop.f32.mrf.mxu0
        %v723 = vadd.f32 %v703, %v722
        %724 = vdwg.mxu0
        %725 = vmatpush.msra.mxu0 %v668
        %726 = vmatpush.msra.mxu0 %v667
        %727 = vmatpush.msra.mxu0 %v666
        %728 = vmatpush.msra.mxu0 %v665
        %729 = vmatpush.msra.mxu0 %v664
        %730 = vmatpush.msra.mxu0 %v663
        %731 = vmatpush.msra.mxu0 %v662
        %732 = vmatpush.msra.mxu0 %v661
        %733 = vmatpush.msra.mxu0 %v660
        %734 = vmatpush.msra.mxu0 %v659
        %735 = vmatpush.msra.mxu0 %v658
        %736 = vmatpush.msra.mxu0 %v657
        %737 = vmatpush.msra.mxu0 %v656
        %738 = vmatpush.msra.mxu0 %v655
        %739 = vmatpush.msra.mxu0 %v654
        %740 = vmatpush.msra.mxu0 %v653
        %741 = vmatmul.f32.gmra.mxu0 %v619
        %v742 = vpop.f32.mrf.mxu0
        %v743 = vadd.f32 %v723, %v742
        %744 = vdwg.mxu0
        %745 = vmatpush.msra.mxu0 %v684
        %746 = vmatpush.msra.mxu0 %v683
        %747 = vmatpush.msra.mxu0 %v682
        %748 = vmatpush.msra.mxu0 %v681
        %749 = vmatpush.msra.mxu0 %v680
        %750 = vmatpush.msra.mxu0 %v679
        %751 = vmatpush.msra.mxu0 %v678
        %752 = vmatpush.msra.mxu0 %v677
        %753 = vmatpush.msra.mxu0 %v676
        %754 = vmatpush.msra.mxu0 %v675
        %755 = vmatpush.msra.mxu0 %v674
        %756 = vmatpush.msra.mxu0 %v673
        %757 = vmatpush.msra.mxu0 %v672
        %758 = vmatpush.msra.mxu0 %v671
        %759 = vmatpush.msra.mxu0 %v670
        %760 = vmatpush.msra.mxu0 %v669
        %761 = vmatmul.f32.gmra.mxu0 %v620
        %v762 = vpop.f32.mrf.mxu0
        %v763 = vadd.f32 %v743, %v762
        %764 = vdwg.mxu0
        %765 = vst [vmem:[%s295] sm:$0xff] %v763
        %s766 = sand.u32 %s148, 1
        %s767 = scalar_lea.sflag [#allocation7], %s766
        %s768 = sand.u32 %s148, 1
        %s769 = smul.addr %s768, 8
        %s770 = scalar_lea.vmem [#allocation13], %s769
        // Predicated region
        $region57: #{tpu_custom_call.1} parent=35 // pred_check
          %p771 = pneg %p158
        $region58: #{tpu_custom_call.1} parent=35 // pred_check_branch
          %773 = sbr.rel (%p771) target = $region60
        $region59: #{tpu_custom_call.1} parent=35 // pred_region
          %775 = vsyncadd %s767, 0
          %s776 = sadd.s32 %s37, %s36
          %s777 = smul.addr %s776, 8
          %s778 = scalar_lea.hbm %s5, %s777
          %s780 = sshll.u32 %s770, 4
          %s781 = int_to_ptr.vmem [resolvable:$true] %s780
          %s782 = sshll.u32 %s778, 4
          %s783 = int_to_ptr.hbm [resolvable:$true] %s782
          %785 = dma.vmem_to_hbm [thread:$0]  %s781, 128, %s783, %s767
        $region60: #{tpu_custom_call.1} parent=35 // pred_fallthru
          _
      $region36: #{tpu_custom_call.1} parent=5 // pred_fallthru
        _
      %p786 = scmp.le.s32.totalorder 2, %s27
      // Predicated region
      $region61: #{tpu_custom_call.1} parent=5 // pred_check
        %p787 = pneg %p786
      $region62: #{tpu_custom_call.1} parent=5 // pred_check_branch
        %789 = sbr.rel (%p787) target = $region64
      $region63: #{tpu_custom_call.1} parent=5 // pred_region
        %s790 = ssub.s32 %s27, 2
        // Predicated region
        $region65: #{tpu_custom_call.1} parent=63 // pred_check
          %p791 = pneg %p164
        $region66: #{tpu_custom_call.1} parent=63 // pred_check_branch
          %793 = sbr.rel (%p791) target = $region68
        $region67: #{tpu_custom_call.1} parent=63 // pred_region
          %s794 = sand.u32 %s149, 1
          %s795 = scalar_lea.sflag [#allocation7], %s794
          %s796 = sand.u32 %s149, 1
          %s797 = smul.addr %s796, 8
          %s798 = scalar_lea.vmem [#allocation13], %s797
          %800 = dma.done %s795, 128
        $region68: #{tpu_custom_call.1} parent=63 // pred_fallthru
          _
      $region64: #{tpu_custom_call.1} parent=5 // pred_fallthru
        _
    $region6: #{tpu_custom_call.1} parent=1 // loop_footer
      %s31 = sadd.s32 1, %s27
    $region7: #{tpu_custom_call.1} parent=1 // loop_footer_branch
      %26 = sbr.rel target = $region3
    $region8: #{tpu_custom_call.1} parent=1 // loop_exit
      _
    %801 = vsyncpa [#allocation6], 1
    %s802 = scalar_lea.sflag [#allocation6], 1
    %803 = vsyncpa %s802, 1
    %804 = vsyncpa [#allocation9], 1
    %805 = vsyncpa [#allocation12], 1
    %806 = vsyncpa [#allocation7], 1
    %s807 = scalar_lea.sflag [#allocation7], 1
    %808 = vsyncpa %s807, 1

// kernel: tpu_custom_call.1
$region0: #{tpu_custom_call.1}
  #allocation0 [shape = 'u32[]', space=smem, size = 0x4, offset = 0x4, fixed_abs, tag = 'smem constant byte address 0x4 - core index']
  #allocation1 [shape = 'u32[72,128]{1,0:T(1,128)}', space=vmem, size = 0x9000, scoped, tag = 'internal scratch']
  #allocation2 [shape = 'f32[8,512]{1,0:T(8,128)}', space=vmem, size = 0x4000, scoped, tag = 'scratch operand']
  #allocation3 [shape = 's32[1]{0}', space=sflag, size = 0x4, scoped, tag = 'scoped memory for tpu_custom_call.1']
  #allocation4 [shape = 'u8[512]{0}', space=smem, size = 0x200, scoped, tag = 'prefetched SMEM operand 0']
  %s0 = inlined_call_operand.hbm [shape: f32[2], index: 0, kind: input, shape index: {}]
  %s1 = inlined_call_operand.hbm [shape: f32[16,512], index: 1, kind: input, shape index: {}]
  %s2 = inlined_call_operand.hbm [shape: f32[512,128], index: 2, kind: input, shape index: {}]
  %s3 = inlined_call_operand.hbm [shape: f32[128,512], index: 3, kind: input, shape index: {}]
  %s4 = inlined_call_operand.hbm [shape: f32[512,128], index: 4, kind: input, shape index: {}]
  %s5 = inlined_call_operand.hbm [shape: f32[16,128], index: 5, kind: output, shape index: {}]
  %s6 = sld [smem:[#allocation0]]
  $region69: #{tpu_custom_call.1} parent=0
    _
  %s8 = ssub.s32 1, %s6
  %s9 = scalar_select 0, %s8, %s6
  %s11 = sshll.u32 %s0, 4
  %s12 = int_to_ptr.hbm [resolvable:$true] %s11
  %14 = dma.hbm_to_smem %s12, 16, [#allocation4], [#allocation3]
  %16 = dma.done [#allocation3], 16
  %17 = sfence
  $region1: #{tpu_custom_call.1} parent=0
    #allocation5 [shape = 'u8[32768]{0}', space=vmem, size = 0x8000, scoped, tag = 'input window, operand 1']
    #allocation6 [shape = 's32[2]{0}', space=sflag, size = 0x8, scoped, tag = 'scoped memory for tpu_custom_call.1']
    #allocation7 [shape = 's32[2]{0}', space=sflag, size = 0x8, scoped, tag = 'scoped memory for tpu_custom_call.1']
    #allocation8 [shape = 'u8[262144]{0}', space=vmem, size = 0x40000, scoped, tag = 'input window, operand 2, single buffered']
    #allocation9 [shape = 's32[1]{0}', space=sflag, size = 0x4, scoped, tag = 'scoped memory for tpu_custom_call.1']
    #allocation10 [shape = 'u8[262144]{0}', space=vmem, size = 0x40000, scoped, tag = 'input window, operand 3, single buffered']
    #allocation11 [shape = 'u8[262144]{0}', space=vmem, size = 0x40000, scoped, tag = 'input window, operand 4, single buffered']
    #allocation12 [shape = 's32[1]{0}', space=sflag, size = 0x4, scoped, tag = 'scoped memory for tpu_custom_call.1']
    #allocation13 [shape = 'u8[8192]{0}', space=vmem, size = 0x2000, scoped, tag = 'output window, operand 0']
    %18 = vsyncpa [#allocation6], 0
    %s19 = scalar_lea.sflag [#allocation6], 1
    %20 = vsyncpa %s19, 0
    %21 = vsyncpa [#allocation9], 0
    %22 = vsyncpa [#allocation12], 0
    %23 = vsyncpa [#allocation7], 0
    %s24 = scalar_lea.sflag [#allocation7], 1
    %25 = vsyncpa %s24, 0
    loop: start=0, step=1, limit=4
    $region2: #{tpu_custom_call.1} parent=1 // loop_pre_header
      _
    $region3: #{tpu_custom_call.1} parent=1 // loop_header
      %s27 = sphi 0, %s31
      %p28 = scmp.ge.s32.totalorder %s27, 4
      %s34 = sphi 0, %s46
      %s35 = sphi 0, %s42
      %s36 = sphi 0, %s34
      %s37 = sphi 0, %s35
      %s38 = sphi 0, %s36
      %s39 = sphi 0, %s37
      %s49 = sphi 0, %s51
      %s52 = sphi 0, %s49
      %s53 = sphi 0, %s52
      %s69 = sphi 0, %s53
      %s73 = sphi 0, %s73
      %s75 = sphi 0, %s73
      %s76 = sphi 0, %s75
      %s90 = sphi 0, %s76
      %s94 = sphi 0, %s94
      %s96 = sphi 0, %s94
      %s97 = sphi 0, %s96
      %s111 = sphi 0, %s97
      %s117 = sphi 0, %s119
      %s120 = sphi 0, %s117
      %s121 = sphi 0, %s120
      %s137 = sphi 0, %s121
      %s145 = sphi 0, %s147
      %s148 = sphi 0, %s145
      %s149 = sphi 0, %s148
      %s165 = sphi 0, %s149
    $region4: #{tpu_custom_call.1} parent=1 // loop_header_branch
      %30 = sbr.rel (%p28) target = $region8
    $region5: #{tpu_custom_call.1} parent=1 // loop_body
      %s32 = ssub.s32 %s27, 1
      %s33 = ssub.s32 %s27, 2
      %s40 = sadd.s32 1, %s35
      %p41 = scmp.ge.s32.totalorder %s40, 1
      %s42 = scalar_select %p41, 0, %s40
      %s43 = sadd.s32 1, %s34
      %s44 = scalar_select %p41, %s43, %s34
      %p45 = scmp.ge.s32.totalorder %s44, 2
      %s46 = scalar_select %p45, 0, %s44
      %s47 = ssub.s32 %s34, %s46
      %p48 = scmp.eq.s32.totalorder %s47, 0
      %s50 = sadd.s32 %s49, 1
      %s51 = scalar_select %p48, %s49, %s50
      %p54 = pneg %p48
      %p55 = scmp.eq.s32.totalorder %s27, 1
      %p56 = por %p54, %p55
      %p57 = scmp.ne.s32.totalorder %s49, %s52
      %p58 = scmp.eq.s32.totalorder %s27, 0
      %p59 = por %p57, %p58
      %p60 = scmp.ne.s32.totalorder %s49, %s52
      %p61 = scmp.eq.s32.totalorder %s32, 1
      %p62 = por %p60, %p61
      %p63 = scmp.ne.s32.totalorder %s52, %s53
      %p64 = scmp.eq.s32.totalorder %s32, 0
      %p65 = por %p63, %p64
      %p66 = scmp.ne.s32.totalorder %s52, %s53
      %p67 = scmp.eq.s32.totalorder %s33, 1
      %p68 = por %p66, %p67
      %p70 = scmp.ne.s32.totalorder %s53, %s69
      %p71 = scmp.eq.s32.totalorder %s33, 0
      %p72 = por %p70, %p71
      %s74 = sadd.s32 %s73, 1
      %p77 = scmp.eq.s32.totalorder %s27, 1
      %p78 = scmp.ne.s32.totalorder %s73, %s75
      %p79 = scmp.eq.s32.totalorder %s27, 0
      %p80 = por %p78, %p79
      %p81 = scmp.ne.s32.totalorder %s73, %s75
      %p82 = scmp.eq.s32.totalorder %s32, 1
      %p83 = por %p81, %p82
      %p84 = scmp.ne.s32.totalorder %s75, %s76
      %p85 = scmp.eq.s32.totalorder %s32, 0
      %p86 = por %p84, %p85
      %p87 = scmp.ne.s32.totalorder %s75, %s76
      %p88 = scmp.eq.s32.totalorder %s33, 1
      %p89 = por %p87, %p88
      %p91 = scmp.ne.s32.totalorder %s76, %s90
      %p92 = scmp.eq.s32.totalorder %s33, 0
      %p93 = por %p91, %p92
      %s95 = sadd.s32 %s94, 1
      %p98 = scmp.eq.s32.totalorder %s27, 1
      %p99 = scmp.ne.s32.totalorder %s94, %s96
      %p100 = scmp.eq.s32.totalorder %s27, 0
      %p101 = por %p99, %p100
      %p102 = scmp.ne.s32.totalorder %s94, %s96
      %p103 = scmp.eq.s32.totalorder %s32, 1
      %p104 = por %p102, %p103
      %p105 = scmp.ne.s32.totalorder %s96, %s97
      %p106 = scmp.eq.s32.totalorder %s32, 0
      %p107 = por %p105, %p106
      %p108 = scmp.ne.s32.totalorder %s96, %s97
      %p109 = scmp.eq.s32.totalorder %s33, 1
      %p110 = por %p108, %p109
      %p112 = scmp.ne.s32.totalorder %s97, %s111
      %p113 = scmp.eq.s32.totalorder %s33, 0
      %p114 = por %p112, %p113
      %s115 = ssub.s32 %s35, %s42
      %p116 = scmp.eq.s32.totalorder %s115, 0
      %s118 = sadd.s32 %s117, 1
      %s119 = scalar_select %p116, %s117, %s118
      %p122 = pneg %p116
      %p123 = scmp.eq.s32.totalorder %s27, 1
      %p124 = por %p122, %p123
      %p125 = scmp.ne.s32.totalorder %s117, %s120
      %p126 = scmp.eq.s32.totalorder %s27, 0
      %p127 = por %p125, %p126
      %p128 = scmp.ne.s32.totalorder %s117, %s120
      %p129 = scmp.eq.s32.totalorder %s32, 1
      %p130 = por %p128, %p129
      %p131 = scmp.ne.s32.totalorder %s120, %s121
      %p132 = scmp.eq.s32.totalorder %s32, 0
      %p133 = por %p131, %p132
      %p134 = scmp.ne.s32.totalorder %s120, %s121
      %p135 = scmp.eq.s32.totalorder %s33, 1
      %p136 = por %p134, %p135
      %p138 = scmp.ne.s32.totalorder %s121, %s137
      %p139 = scmp.eq.s32.totalorder %s33, 0
      %p140 = por %p138, %p139
      %s141 = ssub.s32 %s34, %s46
      %s142 = ssub.s32 %s35, %s42
      %s143 = sor.u32 %s141, %s142
      %p144 = scmp.eq.s32.totalorder %s143, 0
      %s146 = sadd.s32 %s145, 1
      %s147 = scalar_select %p144, %s145, %s146
      %p150 = pneg %p144
      %p151 = scmp.eq.s32.totalorder %s27, 1
      %p152 = por %p150, %p151
      %p153 = scmp.ne.s32.totalorder %s145, %s148
      %p154 = scmp.eq.s32.totalorder %s27, 0
      %p155 = por %p153, %p154
      %p156 = scmp.ne.s32.totalorder %s145, %s148
      %p157 = scmp.eq.s32.totalorder %s32, 1
      %p158 = por %p156, %p157
      %p159 = scmp.ne.s32.totalorder %s148, %s149
      %p160 = scmp.eq.s32.totalorder %s32, 0
      %p161 = por %p159, %p160
      %p162 = scmp.ne.s32.totalorder %s148, %s149
      %p163 = scmp.eq.s32.totalorder %s33, 1
      %p164 = por %p162, %p163
      %p166 = scmp.ne.s32.totalorder %s149, %s165
      %p167 = scmp.eq.s32.totalorder %s33, 0
      %p168 = por %p166, %p167
      %p169 = scmp.le.s32.totalorder 1, %s27
      %p170 = scmp.lt.s32.totalorder %s27, 3
      %p171 = pnand %p169, %p170
      %p172 = pneg %p171
      // Predicated region
      $region9: #{tpu_custom_call.1} parent=5 // pred_check
        _
      $region10: #{tpu_custom_call.1} parent=5 // pred_check_branch
        %174 = sbr.rel (%p171) target = $region12
      $region11: #{tpu_custom_call.1} parent=5 // pred_region
        %s175 = ssub.s32 %s27, 1
        // Predicated region
        $region13: #{tpu_custom_call.1} parent=11 // pred_check
          %p176 = pneg %p86
        $region14: #{tpu_custom_call.1} parent=11 // pred_check_branch
          %178 = sbr.rel (%p176) target = $region16
        $region15: #{tpu_custom_call.1} parent=11 // pred_region
          %180 = vsyncadd [#allocation9], 0
          %s181 = sshll.u32 %s2, 4
          %s182 = int_to_ptr.hbm [resolvable:$true] %s181
          %s183 = sshll.u32 [#allocation8], 4
          %s184 = int_to_ptr.vmem [resolvable:$true] %s183
          %189 = dma.hbm_to_vmem [thread:$0]  %s182, 8192, %s184, [#allocation9], 128, 128, 8
        $region16: #{tpu_custom_call.1} parent=11 // pred_fallthru
          _
        // Predicated region
        $region17: #{tpu_custom_call.1} parent=11 // pred_check
          %p190 = pneg %p107
        $region18: #{tpu_custom_call.1} parent=11 // pred_check_branch
          %192 = sbr.rel (%p190) target = $region20
        $region19: #{tpu_custom_call.1} parent=11 // pred_region
          %194 = vsyncadd [#allocation9], 0
          %s195 = sshll.u32 %s3, 4
          %s196 = int_to_ptr.hbm [resolvable:$true] %s195
          %s197 = sshll.u32 [#allocation10], 4
          %s198 = int_to_ptr.vmem [resolvable:$true] %s197
          %203 = dma.hbm_to_vmem [thread:$0]  %s196, 8192, %s198, [#allocation9], 512, 512, 32
        $region20: #{tpu_custom_call.1} parent=11 // pred_fallthru
          _
        // Predicated region
        $region21: #{tpu_custom_call.1} parent=11 // pred_check
          %p204 = pneg %p133
        $region22: #{tpu_custom_call.1} parent=11 // pred_check_branch
          %206 = sbr.rel (%p204) target = $region24
        $region23: #{tpu_custom_call.1} parent=11 // pred_region
          %208 = vsyncadd [#allocation12], 0
          %s209 = smul.addr %s37, 8
          %s210 = scalar_lea.hbm %s4, %s209
          %s211 = sshll.u32 %s210, 4
          %s212 = int_to_ptr.hbm [resolvable:$true] %s211
          %s213 = sshll.u32 [#allocation11], 4
          %s214 = int_to_ptr.vmem [resolvable:$true] %s213
          %219 = dma.hbm_to_vmem [thread:$0]  %s212, 8192, %s214, [#allocation12], 128, 128, 8
        $region24: #{tpu_custom_call.1} parent=11 // pred_fallthru
          _
      $region12: #{tpu_custom_call.1} parent=5 // pred_fallthru
        _
      %p220 = scmp.lt.s32.totalorder %s27, 2
      // Predicated region
      $region25: #{tpu_custom_call.1} parent=5 // pred_check
        %p221 = pneg %p220
      $region26: #{tpu_custom_call.1} parent=5 // pred_check_branch
        %223 = sbr.rel (%p221) target = $region28
      $region27: #{tpu_custom_call.1} parent=5 // pred_region
        // Predicated region
        $region29: #{tpu_custom_call.1} parent=27 // pred_check
          %p224 = pneg %p59
        $region30: #{tpu_custom_call.1} parent=27 // pred_check_branch
          %226 = sbr.rel (%p224) target = $region32
        $region31: #{tpu_custom_call.1} parent=27 // pred_region
          %s227 = sand.u32 %s49, 1
          %s228 = scalar_lea.sflag [#allocation6], %s227
          %s229 = sand.u32 %s49, 1
          %s230 = smul.addr %s229, 32
          %s231 = scalar_lea.vmem [#allocation5], %s230
          %233 = vsyncadd %s228, 0
          %s234 = smul.addr %s34, 4
          %s235 = smul.addr %s234, 8
          %s236 = scalar_lea.hbm %s1, %s235
          %s238 = sshll.u32 %s236, 4
          %s239 = int_to_ptr.hbm [resolvable:$true] %s238
          %s240 = sshll.u32 %s231, 4
          %s241 = int_to_ptr.vmem [resolvable:$true] %s240
          %243 = dma.hbm_to_vmem [thread:$0]  %s239, 512, %s241, %s228
        $region32: #{tpu_custom_call.1} parent=27 // pred_fallthru
          _
      $region28: #{tpu_custom_call.1} parent=5 // pred_fallthru
        _
      %p244 = scmp.le.s32.totalorder 1, %s27
      %p245 = scmp.lt.s32.totalorder %s27, 3
      %p246 = pnand %p244, %p245
      %p247 = pneg %p246
      // Predicated region
      $region33: #{tpu_custom_call.1} parent=5 // pred_check
        _
      $region34: #{tpu_custom_call.1} parent=5 // pred_check_branch
        %249 = sbr.rel (%p246) target = $region36
      $region35: #{tpu_custom_call.1} parent=5 // pred_region
        %s250 = ssub.s32 %s27, 1
        %s251 = sand.u32 %s52, 1
        %s252 = scalar_lea.sflag [#allocation6], %s251
        %s253 = sand.u32 %s52, 1
        %s254 = smul.addr %s253, 32
        %s255 = scalar_lea.vmem [#allocation5], %s254
        // Predicated region
        $region37: #{tpu_custom_call.1} parent=35 // pred_check
          %p256 = pneg %p65
        $region38: #{tpu_custom_call.1} parent=35 // pred_check_branch
          %258 = sbr.rel (%p256) target = $region40
        $region39: #{tpu_custom_call.1} parent=35 // pred_region
          %260 = dma.done %s252, 512
        $region40: #{tpu_custom_call.1} parent=35 // pred_fallthru
          _
        // Predicated region
        $region41: #{tpu_custom_call.1} parent=35 // pred_check
          %p261 = pneg %p86
        $region42: #{tpu_custom_call.1} parent=35 // pred_check_branch
          %263 = sbr.rel (%p261) target = $region44
        $region43: #{tpu_custom_call.1} parent=35 // pred_region
          %265 = dma.done [#allocation9], 8192
        $region44: #{tpu_custom_call.1} parent=35 // pred_fallthru
          _
        // Predicated region
        $region45: #{tpu_custom_call.1} parent=35 // pred_check
          %p266 = pneg %p107
        $region46: #{tpu_custom_call.1} parent=35 // pred_check_branch
          %268 = sbr.rel (%p266) target = $region48
        $region47: #{tpu_custom_call.1} parent=35 // pred_region
          %270 = dma.done [#allocation9], 8192
        $region48: #{tpu_custom_call.1} parent=35 // pred_fallthru
          _
        // Predicated region
        $region49: #{tpu_custom_call.1} parent=35 // pred_check
          %p271 = pneg %p133
        $region50: #{tpu_custom_call.1} parent=35 // pred_check_branch
          %273 = sbr.rel (%p271) target = $region52
        $region51: #{tpu_custom_call.1} parent=35 // pred_region
          %275 = dma.done [#allocation12], 8192
        $region52: #{tpu_custom_call.1} parent=35 // pred_fallthru
          _
        %s276 = sand.u32 %s52, 1
        %s277 = scalar_lea.sflag [#allocation6], %s276
        %s278 = sand.u32 %s52, 1
        %s279 = smul.addr %s278, 32
        %s280 = scalar_lea.vmem [#allocation5], %s279
        %p281 = pneg %p65
        %p282 = pneg %p62
        %p283 = pneg %p86
        %p284 = pneg %p83
        %p285 = pneg %p107
        %p286 = pneg %p104
        %p287 = pneg %p133
        %p288 = pneg %p130
        %p289 = pneg %p161
        %p290 = pneg %p158
        %s291 = sand.u32 %s148, 1
        %s292 = scalar_lea.sflag [#allocation7], %s291
        %s293 = sand.u32 %s148, 1
        %s294 = smul.addr %s293, 8
        %s295 = scalar_lea.vmem [#allocation13], %s294
        %p296 = scmp.eq.s32.totalorder %s37, 0
        // Predicated region
        $region53: #{tpu_custom_call.1} parent=35 // pred_check
          %p297 = pneg %p296
        $region54: #{tpu_custom_call.1} parent=35 // pred_check_branch
          %299 = sbr.rel (%p297) target = $region56
        $region55: #{tpu_custom_call.1} parent=35 // pred_region
          %s300 = sld [smem:[#allocation4]]
          %s301 = sld [smem:[#allocation4 + $0x1]]
          %v302 = vld [vmem:[%s255] sm:$0xff]
          %v303 = vld [vmem:[%s255 + $0x8] sm:$0xff]
          %v304 = vld [vmem:[%s255 + $0x10] sm:$0xff]
          %v305 = vld [vmem:[%s255 + $0x18] sm:$0xff]
          %v306 = vld [vmem:[#allocation8] sm:$0xff]
          %v307 = vld [vmem:[#allocation8 + $0x8] sm:$0xff]
          %v308 = vld [vmem:[#allocation8 + $0x10] sm:$0xff]
          %v309 = vld [vmem:[#allocation8 + $0x18] sm:$0xff]
          %v310 = vld [vmem:[#allocation8 + $0x20] sm:$0xff]
          %v311 = vld [vmem:[#allocation8 + $0x28] sm:$0xff]
          %v312 = vld [vmem:[#allocation8 + $0x30] sm:$0xff]
          %v313 = vld [vmem:[#allocation8 + $0x38] sm:$0xff]
          %v314 = vld [vmem:[#allocation8 + $0x40] sm:$0xff]
          %v315 = vld [vmem:[#allocation8 + $0x48] sm:$0xff]
          %v316 = vld [vmem:[#allocation8 + $0x50] sm:$0xff]
          %v317 = vld [vmem:[#allocation8 + $0x58] sm:$0xff]
          %v318 = vld [vmem:[#allocation8 + $0x60] sm:$0xff]
          %v319 = vld [vmem:[#allocation8 + $0x68] sm:$0xff]
          %v320 = vld [vmem:[#allocation8 + $0x70] sm:$0xff]
          %v321 = vld [vmem:[#allocation8 + $0x78] sm:$0xff]
          %v322 = vld [vmem:[#allocation8 + $0x80] sm:$0xff]
          %v323 = vld [vmem:[#allocation8 + $0x88] sm:$0xff]
          %v324 = vld [vmem:[#allocation8 + $0x90] sm:$0xff]
          %v325 = vld [vmem:[#allocation8 + $0x98] sm:$0xff]
          %v326 = vld [vmem:[#allocation8 + $0xa0] sm:$0xff]
          %v327 = vld [vmem:[#allocation8 + $0xa8] sm:$0xff]
          %v328 = vld [vmem:[#allocation8 + $0xb0] sm:$0xff]
          %v329 = vld [vmem:[#allocation8 + $0xb8] sm:$0xff]
          %v330 = vld [vmem:[#allocation8 + $0xc0] sm:$0xff]
          %v331 = vld [vmem:[#allocation8 + $0xc8] sm:$0xff]
          %v332 = vld [vmem:[#allocation8 + $0xd0] sm:$0xff]
          %v333 = vld [vmem:[#allocation8 + $0xd8] sm:$0xff]
          %v334 = vld [vmem:[#allocation8 + $0xe0] sm:$0xff]
          %v335 = vld [vmem:[#allocation8 + $0xe8] sm:$0xff]
          %v336 = vld [vmem:[#allocation8 + $0xf0] sm:$0xff]
          %v337 = vld [vmem:[#allocation8 + $0xf8] sm:$0xff]
          %v338 = vld [vmem:[#allocation8 + $0x100] sm:$0xff]
          %v339 = vld [vmem:[#allocation8 + $0x108] sm:$0xff]
          %v340 = vld [vmem:[#allocation8 + $0x110] sm:$0xff]
          %v341 = vld [vmem:[#allocation8 + $0x118] sm:$0xff]
          %v342 = vld [vmem:[#allocation8 + $0x120] sm:$0xff]
          %v343 = vld [vmem:[#allocation8 + $0x128] sm:$0xff]
          %v344 = vld [vmem:[#allocation8 + $0x130] sm:$0xff]
          %v345 = vld [vmem:[#allocation8 + $0x138] sm:$0xff]
          %v346 = vld [vmem:[#allocation8 + $0x140] sm:$0xff]
          %v347 = vld [vmem:[#allocation8 + $0x148] sm:$0xff]
          %v348 = vld [vmem:[#allocation8 + $0x150] sm:$0xff]
          %v349 = vld [vmem:[#allocation8 + $0x158] sm:$0xff]
          %v350 = vld [vmem:[#allocation8 + $0x160] sm:$0xff]
          %v351 = vld [vmem:[#allocation8 + $0x168] sm:$0xff]
          %v352 = vld [vmem:[#allocation8 + $0x170] sm:$0xff]
          %v353 = vld [vmem:[#allocation8 + $0x178] sm:$0xff]
          %v354 = vld [vmem:[#allocation8 + $0x180] sm:$0xff]
          %v355 = vld [vmem:[#allocation8 + $0x188] sm:$0xff]
          %v356 = vld [vmem:[#allocation8 + $0x190] sm:$0xff]
          %v357 = vld [vmem:[#allocation8 + $0x198] sm:$0xff]
          %v358 = vld [vmem:[#allocation8 + $0x1a0] sm:$0xff]
          %v359 = vld [vmem:[#allocation8 + $0x1a8] sm:$0xff]
          %v360 = vld [vmem:[#allocation8 + $0x1b0] sm:$0xff]
          %v361 = vld [vmem:[#allocation8 + $0x1b8] sm:$0xff]
          %v362 = vld [vmem:[#allocation8 + $0x1c0] sm:$0xff]
          %v363 = vld [vmem:[#allocation8 + $0x1c8] sm:$0xff]
          %v364 = vld [vmem:[#allocation8 + $0x1d0] sm:$0xff]
          %v365 = vld [vmem:[#allocation8 + $0x1d8] sm:$0xff]
          %v366 = vld [vmem:[#allocation8 + $0x1e0] sm:$0xff]
          %v367 = vld [vmem:[#allocation8 + $0x1e8] sm:$0xff]
          %v368 = vld [vmem:[#allocation8 + $0x1f0] sm:$0xff]
          %v369 = vld [vmem:[#allocation8 + $0x1f8] sm:$0xff]
          %370 = vmatpush.msra.mxu0 %v321
          %371 = vmatpush.msra.mxu0 %v320
          %372 = vmatpush.msra.mxu0 %v319
          %373 = vmatpush.msra.mxu0 %v318
          %374 = vmatpush.msra.mxu0 %v317
          %375 = vmatpush.msra.mxu0 %v316
          %376 = vmatpush.msra.mxu0 %v315
          %377 = vmatpush.msra.mxu0 %v314
          %378 = vmatpush.msra.mxu0 %v313
          %379 = vmatpush.msra.mxu0 %v312
          %380 = vmatpush.msra.mxu0 %v311
          %381 = vmatpush.msra.mxu0 %v310
          %382 = vmatpush.msra.mxu0 %v309
          %383 = vmatpush.msra.mxu0 %v308
          %384 = vmatpush.msra.mxu0 %v307
          %385 = vmatpush.msra.mxu0 %v306
          %386 = vmatmul.f32.gmra.mxu0 %v302
          %v387 = vpop.f32.mrf.mxu0
          %v388 = vadd.f32 0.0, %v387
          %389 = vdwg.mxu0
          %390 = vmatpush.msra.mxu0 %v337
          %391 = vmatpush.msra.mxu0 %v336
          %392 = vmatpush.msra.mxu0 %v335
          %393 = vmatpush.msra.mxu0 %v334
          %394 = vmatpush.msra.mxu0 %v333
          %395 = vmatpush.msra.mxu0 %v332
          %396 = vmatpush.msra.mxu0 %v331
          %397 = vmatpush.msra.mxu0 %v330
          %398 = vmatpush.msra.mxu0 %v329
          %399 = vmatpush.msra.mxu0 %v328
          %400 = vmatpush.msra.mxu0 %v327
          %401 = vmatpush.msra.mxu0 %v326
          %402 = vmatpush.msra.mxu0 %v325
          %403 = vmatpush.msra.mxu0 %v324
          %404 = vmatpush.msra.mxu0 %v323
          %405 = vmatpush.msra.mxu0 %v322
          %406 = vmatmul.f32.gmra.mxu0 %v303
          %v407 = vpop.f32.mrf.mxu0
          %v408 = vadd.f32 %v388, %v407
          %409 = vdwg.mxu0
          %410 = vmatpush.msra.mxu0 %v353
          %411 = vmatpush.msra.mxu0 %v352
          %412 = vmatpush.msra.mxu0 %v351
          %413 = vmatpush.msra.mxu0 %v350
          %414 = vmatpush.msra.mxu0 %v349
          %415 = vmatpush.msra.mxu0 %v348
          %416 = vmatpush.msra.mxu0 %v347
          %417 = vmatpush.msra.mxu0 %v346
          %418 = vmatpush.msra.mxu0 %v345
          %419 = vmatpush.msra.mxu0 %v344
          %420 = vmatpush.msra.mxu0 %v343
          %421 = vmatpush.msra.mxu0 %v342
          %422 = vmatpush.msra.mxu0 %v341
          %423 = vmatpush.msra.mxu0 %v340
          %424 = vmatpush.msra.mxu0 %v339
          %425 = vmatpush.msra.mxu0 %v338
          %426 = vmatmul.f32.gmra.mxu0 %v304
          %v427 = vpop.f32.mrf.mxu0
          %v428 = vadd.f32 %v408, %v427
          %429 = vdwg.mxu0
          %430 = vmatpush.msra.mxu0 %v369
          %431 = vmatpush.msra.mxu0 %v368
          %432 = vmatpush.msra.mxu0 %v367
          %433 = vmatpush.msra.mxu0 %v366
          %434 = vmatpush.msra.mxu0 %v365
          %435 = vmatpush.msra.mxu0 %v364
          %436 = vmatpush.msra.mxu0 %v363
          %437 = vmatpush.msra.mxu0 %v362
          %438 = vmatpush.msra.mxu0 %v361
          %439 = vmatpush.msra.mxu0 %v360
          %440 = vmatpush.msra.mxu0 %v359
          %441 = vmatpush.msra.mxu0 %v358
          %442 = vmatpush.msra.mxu0 %v357
          %443 = vmatpush.msra.mxu0 %v356
          %444 = vmatpush.msra.mxu0 %v355
          %445 = vmatpush.msra.mxu0 %v354
          %446 = vmatmul.f32.gmra.mxu0 %v305
          %v447 = vpop.f32.mrf.mxu0
          %v448 = vadd.f32 %v428, %v447
          %449 = vdwg.mxu0
          %v450 = vmax.f32 %v448, 0.0
          %v451 = vld [vmem:[#allocation10] sm:$0xff]
          %v452 = vld [vmem:[#allocation10 + $0x8] sm:$0xff]
          %v453 = vld [vmem:[#allocation10 + $0x10] sm:$0xff]
          %v454 = vld [vmem:[#allocation10 + $0x18] sm:$0xff]
          %v455 = vld [vmem:[#allocation10 + $0x20] sm:$0xff]
          %v456 = vld [vmem:[#allocation10 + $0x28] sm:$0xff]
          %v457 = vld [vmem:[#allocation10 + $0x30] sm:$0xff]
          %v458 = vld [vmem:[#allocation10 + $0x38] sm:$0xff]
          %v459 = vld [vmem:[#allocation10 + $0x40] sm:$0xff]
          %v460 = vld [vmem:[#allocation10 + $0x48] sm:$0xff]
          %v461 = vld [vmem:[#allocation10 + $0x50] sm:$0xff]
          %v462 = vld [vmem:[#allocation10 + $0x58] sm:$0xff]
          %v463 = vld [vmem:[#allocation10 + $0x60] sm:$0xff]
          %v464 = vld [vmem:[#allocation10 + $0x68] sm:$0xff]
          %v465 = vld [vmem:[#allocation10 + $0x70] sm:$0xff]
          %v466 = vld [vmem:[#allocation10 + $0x78] sm:$0xff]
          %v467 = vld [vmem:[#allocation10 + $0x80] sm:$0xff]
          %v468 = vld [vmem:[#allocation10 + $0x88] sm:$0xff]
          %v469 = vld [vmem:[#allocation10 + $0x90] sm:$0xff]
          %v470 = vld [vmem:[#allocation10 + $0x98] sm:$0xff]
          %v471 = vld [vmem:[#allocation10 + $0xa0] sm:$0xff]
          %v472 = vld [vmem:[#allocation10 + $0xa8] sm:$0xff]
          %v473 = vld [vmem:[#allocation10 + $0xb0] sm:$0xff]
          %v474 = vld [vmem:[#allocation10 + $0xb8] sm:$0xff]
          %v475 = vld [vmem:[#allocation10 + $0xc0] sm:$0xff]
          %v476 = vld [vmem:[#allocation10 + $0xc8] sm:$0xff]
          %v477 = vld [vmem:[#allocation10 + $0xd0] sm:$0xff]
          %v478 = vld [vmem:[#allocation10 + $0xd8] sm:$0xff]
          %v479 = vld [vmem:[#allocation10 + $0xe0] sm:$0xff]
          %v480 = vld [vmem:[#allocation10 + $0xe8] sm:$0xff]
          %v481 = vld [vmem:[#allocation10 + $0xf0] sm:$0xff]
          %v482 = vld [vmem:[#allocation10 + $0xf8] sm:$0xff]
          %v483 = vld [vmem:[#allocation10 + $0x100] sm:$0xff]
          %v484 = vld [vmem:[#allocation10 + $0x108] sm:$0xff]
          %v485 = vld [vmem:[#allocation10 + $0x110] sm:$0xff]
          %v486 = vld [vmem:[#allocation10 + $0x118] sm:$0xff]
          %v487 = vld [vmem:[#allocation10 + $0x120] sm:$0xff]
          %v488 = vld [vmem:[#allocation10 + $0x128] sm:$0xff]
          %v489 = vld [vmem:[#allocation10 + $0x130] sm:$0xff]
          %v490 = vld [vmem:[#allocation10 + $0x138] sm:$0xff]
          %v491 = vld [vmem:[#allocation10 + $0x140] sm:$0xff]
          %v492 = vld [vmem:[#allocation10 + $0x148] sm:$0xff]
          %v493 = vld [vmem:[#allocation10 + $0x150] sm:$0xff]
          %v494 = vld [vmem:[#allocation10 + $0x158] sm:$0xff]
          %v495 = vld [vmem:[#allocation10 + $0x160] sm:$0xff]
          %v496 = vld [vmem:[#allocation10 + $0x168] sm:$0xff]
          %v497 = vld [vmem:[#allocation10 + $0x170] sm:$0xff]
          %v498 = vld [vmem:[#allocation10 + $0x178] sm:$0xff]
          %v499 = vld [vmem:[#allocation10 + $0x180] sm:$0xff]
          %v500 = vld [vmem:[#allocation10 + $0x188] sm:$0xff]
          %v501 = vld [vmem:[#allocation10 + $0x190] sm:$0xff]
          %v502 = vld [vmem:[#allocation10 + $0x198] sm:$0xff]
          %v503 = vld [vmem:[#allocation10 + $0x1a0] sm:$0xff]
          %v504 = vld [vmem:[#allocation10 + $0x1a8] sm:$0xff]
          %v505 = vld [vmem:[#allocation10 + $0x1b0] sm:$0xff]
          %v506 = vld [vmem:[#allocation10 + $0x1b8] sm:$0xff]
          %v507 = vld [vmem:[#allocation10 + $0x1c0] sm:$0xff]
          %v508 = vld [vmem:[#allocation10 + $0x1c8] sm:$0xff]
          %v509 = vld [vmem:[#allocation10 + $0x1d0] sm:$0xff]
          %v510 = vld [vmem:[#allocation10 + $0x1d8] sm:$0xff]
          %v511 = vld [vmem:[#allocation10 + $0x1e0] sm:$0xff]
          %v512 = vld [vmem:[#allocation10 + $0x1e8] sm:$0xff]
          %v513 = vld [vmem:[#allocation10 + $0x1f0] sm:$0xff]
          %v514 = vld [vmem:[#allocation10 + $0x1f8] sm:$0xff]
          %515 = vmatpush.msra.mxu0 %v511
          %516 = vmatpush.msra.mxu0 %v507
          %517 = vmatpush.msra.mxu0 %v503
          %518 = vmatpush.msra.mxu0 %v499
          %519 = vmatpush.msra.mxu0 %v495
          %520 = vmatpush.msra.mxu0 %v491
          %521 = vmatpush.msra.mxu0 %v487
          %522 = vmatpush.msra.mxu0 %v483
          %523 = vmatpush.msra.mxu0 %v479
          %524 = vmatpush.msra.mxu0 %v475
          %525 = vmatpush.msra.mxu0 %v471
          %526 = vmatpush.msra.mxu0 %v467
          %527 = vmatpush.msra.mxu0 %v463
          %528 = vmatpush.msra.mxu0 %v459
          %529 = vmatpush.msra.mxu0 %v455
          %530 = vmatpush.msra.mxu0 %v451
          %531 = vmatmul.f32.gmra.mxu0 %v450
          %v532 = vpop.f32.mrf.mxu0
          %v533 = vadd.f32 0.0, %v532
          %534 = vdwg.mxu0
          %535 = vmatpush.msra.mxu0 %v512
          %536 = vmatpush.msra.mxu0 %v508
          %537 = vmatpush.msra.mxu0 %v504
          %538 = vmatpush.msra.mxu0 %v500
          %539 = vmatpush.msra.mxu0 %v496
          %540 = vmatpush.msra.mxu0 %v492
          %541 = vmatpush.msra.mxu0 %v488
          %542 = vmatpush.msra.mxu0 %v484
          %543 = vmatpush.msra.mxu0 %v480
          %544 = vmatpush.msra.mxu0 %v476
          %545 = vmatpush.msra.mxu0 %v472
          %546 = vmatpush.msra.mxu0 %v468
          %547 = vmatpush.msra.mxu0 %v464
          %548 = vmatpush.msra.mxu0 %v460
          %549 = vmatpush.msra.mxu0 %v456
          %550 = vmatpush.msra.mxu0 %v452
          %551 = vmatmul.f32.gmra.mxu0 %v450
          %v552 = vpop.f32.mrf.mxu0
          %v553 = vadd.f32 0.0, %v552
          %554 = vdwg.mxu0
          %555 = vmatpush.msra.mxu0 %v513
          %556 = vmatpush.msra.mxu0 %v509
          %557 = vmatpush.msra.mxu0 %v505
          %558 = vmatpush.msra.mxu0 %v501
          %559 = vmatpush.msra.mxu0 %v497
          %560 = vmatpush.msra.mxu0 %v493
          %561 = vmatpush.msra.mxu0 %v489
          %562 = vmatpush.msra.mxu0 %v485
          %563 = vmatpush.msra.mxu0 %v481
          %564 = vmatpush.msra.mxu0 %v477
          %565 = vmatpush.msra.mxu0 %v473
          %566 = vmatpush.msra.mxu0 %v469
          %567 = vmatpush.msra.mxu0 %v465
          %568 = vmatpush.msra.mxu0 %v461
          %569 = vmatpush.msra.mxu0 %v457
          %570 = vmatpush.msra.mxu0 %v453
          %571 = vmatmul.f32.gmra.mxu0 %v450
          %v572 = vpop.f32.mrf.mxu0
          %v573 = vadd.f32 0.0, %v572
          %574 = vdwg.mxu0
          %575 = vmatpush.msra.mxu0 %v514
          %576 = vmatpush.msra.mxu0 %v510
          %577 = vmatpush.msra.mxu0 %v506
          %578 = vmatpush.msra.mxu0 %v502
          %579 = vmatpush.msra.mxu0 %v498
          %580 = vmatpush.msra.mxu0 %v494
          %581 = vmatpush.msra.mxu0 %v490
          %582 = vmatpush.msra.mxu0 %v486
          %583 = vmatpush.msra.mxu0 %v482
          %584 = vmatpush.msra.mxu0 %v478
          %585 = vmatpush.msra.mxu0 %v474
          %586 = vmatpush.msra.mxu0 %v470
          %587 = vmatpush.msra.mxu0 %v466
          %588 = vmatpush.msra.mxu0 %v462
          %589 = vmatpush.msra.mxu0 %v458
          %590 = vmatpush.msra.mxu0 %v454
          %591 = vmatmul.f32.gmra.mxu0 %v450
          %v592 = vpop.f32.mrf.mxu0
          %v593 = vadd.f32 0.0, %v592
          %594 = vdwg.mxu0
          %v595 = vmax.f32 %v533, 0.0
          %v596 = vmax.f32 %v553, 0.0
          %v597 = vmax.f32 %v573, 0.0
          %v598 = vmax.f32 %v593, 0.0
          %v599 = vstv %s300
          %v600 = vmul.f32 %v599, %v595
          %v601 = vmul.f32 %v599, %v596
          %v602 = vmul.f32 %v599, %v597
          %v603 = vmul.f32 %v599, %v598
          %v604 = vstv %s301
          %v605 = vmul.f32 %v604, %v302
          %v606 = vmul.f32 %v604, %v303
          %v607 = vmul.f32 %v604, %v304
          %v608 = vmul.f32 %v604, %v305
          %v609 = vadd.f32 %v600, %v605
          %v610 = vadd.f32 %v601, %v606
          %v611 = vadd.f32 %v602, %v607
          %v612 = vadd.f32 %v603, %v608
          %613 = vst [vmem:[#allocation2] sm:$0xff] %v609
          %614 = vst [vmem:[#allocation2 + $0x8] sm:$0xff] %v610
          %615 = vst [vmem:[#allocation2 + $0x10] sm:$0xff] %v611
          %616 = vst [vmem:[#allocation2 + $0x18] sm:$0xff] %v612
        $region56: #{tpu_custom_call.1} parent=35 // pred_fallthru
          _
        %v617 = vld [vmem:[#allocation2] sm:$0xff]
        %v618 = vld [vmem:[#allocation2 + $0x8] sm:$0xff]
        %v619 = vld [vmem:[#allocation2 + $0x10] sm:$0xff]
        %v620 = vld [vmem:[#allocation2 + $0x18] sm:$0xff]
        %v621 = vld [vmem:[#allocation11] sm:$0xff]
        %v622 = vld [vmem:[#allocation11 + $0x8] sm:$0xff]
        %v623 = vld [vmem:[#allocation11 + $0x10] sm:$0xff]
        %v624 = vld [vmem:[#allocation11 + $0x18] sm:$0xff]
        %v625 = vld [vmem:[#allocation11 + $0x20] sm:$0xff]
        %v626 = vld [vmem:[#allocation11 + $0x28] sm:$0xff]
        %v627 = vld [vmem:[#allocation11 + $0x30] sm:$0xff]
        %v628 = vld [vmem:[#allocation11 + $0x38] sm:$0xff]
        %v629 = vld [vmem:[#allocation11 + $0x40] sm:$0xff]
        %v630 = vld [vmem:[#allocation11 + $0x48] sm:$0xff]
        %v631 = vld [vmem:[#allocation11 + $0x50] sm:$0xff]
        %v632 = vld [vmem:[#allocation11 + $0x58] sm:$0xff]
        %v633 = vld [vmem:[#allocation11 + $0x60] sm:$0xff]
        %v634 = vld [vmem:[#allocation11 + $0x68] sm:$0xff]
        %v635 = vld [vmem:[#allocation11 + $0x70] sm:$0xff]
        %v636 = vld [vmem:[#allocation11 + $0x78] sm:$0xff]
        %v637 = vld [vmem:[#allocation11 + $0x80] sm:$0xff]
        %v638 = vld [vmem:[#allocation11 + $0x88] sm:$0xff]
        %v639 = vld [vmem:[#allocation11 + $0x90] sm:$0xff]
        %v640 = vld [vmem:[#allocation11 + $0x98] sm:$0xff]
        %v641 = vld [vmem:[#allocation11 + $0xa0] sm:$0xff]
        %v642 = vld [vmem:[#allocation11 + $0xa8] sm:$0xff]
        %v643 = vld [vmem:[#allocation11 + $0xb0] sm:$0xff]
        %v644 = vld [vmem:[#allocation11 + $0xb8] sm:$0xff]
        %v645 = vld [vmem:[#allocation11 + $0xc0] sm:$0xff]
        %v646 = vld [vmem:[#allocation11 + $0xc8] sm:$0xff]
        %v647 = vld [vmem:[#allocation11 + $0xd0] sm:$0xff]
        %v648 = vld [vmem:[#allocation11 + $0xd8] sm:$0xff]
        %v649 = vld [vmem:[#allocation11 + $0xe0] sm:$0xff]
        %v650 = vld [vmem:[#allocation11 + $0xe8] sm:$0xff]
        %v651 = vld [vmem:[#allocation11 + $0xf0] sm:$0xff]
        %v652 = vld [vmem:[#allocation11 + $0xf8] sm:$0xff]
        %v653 = vld [vmem:[#allocation11 + $0x100] sm:$0xff]
        %v654 = vld [vmem:[#allocation11 + $0x108] sm:$0xff]
        %v655 = vld [vmem:[#allocation11 + $0x110] sm:$0xff]
        %v656 = vld [vmem:[#allocation11 + $0x118] sm:$0xff]
        %v657 = vld [vmem:[#allocation11 + $0x120] sm:$0xff]
        %v658 = vld [vmem:[#allocation11 + $0x128] sm:$0xff]
        %v659 = vld [vmem:[#allocation11 + $0x130] sm:$0xff]
        %v660 = vld [vmem:[#allocation11 + $0x138] sm:$0xff]
        %v661 = vld [vmem:[#allocation11 + $0x140] sm:$0xff]
        %v662 = vld [vmem:[#allocation11 + $0x148] sm:$0xff]
        %v663 = vld [vmem:[#allocation11 + $0x150] sm:$0xff]
        %v664 = vld [vmem:[#allocation11 + $0x158] sm:$0xff]
        %v665 = vld [vmem:[#allocation11 + $0x160] sm:$0xff]
        %v666 = vld [vmem:[#allocation11 + $0x168] sm:$0xff]
        %v667 = vld [vmem:[#allocation11 + $0x170] sm:$0xff]
        %v668 = vld [vmem:[#allocation11 + $0x178] sm:$0xff]
        %v669 = vld [vmem:[#allocation11 + $0x180] sm:$0xff]
        %v670 = vld [vmem:[#allocation11 + $0x188] sm:$0xff]
        %v671 = vld [vmem:[#allocation11 + $0x190] sm:$0xff]
        %v672 = vld [vmem:[#allocation11 + $0x198] sm:$0xff]
        %v673 = vld [vmem:[#allocation11 + $0x1a0] sm:$0xff]
        %v674 = vld [vmem:[#allocation11 + $0x1a8] sm:$0xff]
        %v675 = vld [vmem:[#allocation11 + $0x1b0] sm:$0xff]
        %v676 = vld [vmem:[#allocation11 + $0x1b8] sm:$0xff]
        %v677 = vld [vmem:[#allocation11 + $0x1c0] sm:$0xff]
        %v678 = vld [vmem:[#allocation11 + $0x1c8] sm:$0xff]
        %v679 = vld [vmem:[#allocation11 + $0x1d0] sm:$0xff]
        %v680 = vld [vmem:[#allocation11 + $0x1d8] sm:$0xff]
        %v681 = vld [vmem:[#allocation11 + $0x1e0] sm:$0xff]
        %v682 = vld [vmem:[#allocation11 + $0x1e8] sm:$0xff]
        %v683 = vld [vmem:[#allocation11 + $0x1f0] sm:$0xff]
        %v684 = vld [vmem:[#allocation11 + $0x1f8] sm:$0xff]
        %685 = vmatpush.msra.mxu0 %v636
        %686 = vmatpush.msra.mxu0 %v635
        %687 = vmatpush.msra.mxu0 %v634
        %688 = vmatpush.msra.mxu0 %v633
        %689 = vmatpush.msra.mxu0 %v632
        %690 = vmatpush.msra.mxu0 %v631
        %691 = vmatpush.msra.mxu0 %v630
        %692 = vmatpush.msra.mxu0 %v629
        %693 = vmatpush.msra.mxu0 %v628
        %694 = vmatpush.msra.mxu0 %v627
        %695 = vmatpush.msra.mxu0 %v626
        %696 = vmatpush.msra.mxu0 %v625
        %697 = vmatpush.msra.mxu0 %v624
        %698 = vmatpush.msra.mxu0 %v623
        %699 = vmatpush.msra.mxu0 %v622
        %700 = vmatpush.msra.mxu0 %v621
        %701 = vmatmul.f32.gmra.mxu0 %v617
        %v702 = vpop.f32.mrf.mxu0
        %v703 = vadd.f32 0.0, %v702
        %704 = vdwg.mxu0
        %705 = vmatpush.msra.mxu0 %v652
        %706 = vmatpush.msra.mxu0 %v651
        %707 = vmatpush.msra.mxu0 %v650
        %708 = vmatpush.msra.mxu0 %v649
        %709 = vmatpush.msra.mxu0 %v648
        %710 = vmatpush.msra.mxu0 %v647
        %711 = vmatpush.msra.mxu0 %v646
        %712 = vmatpush.msra.mxu0 %v645
        %713 = vmatpush.msra.mxu0 %v644
        %714 = vmatpush.msra.mxu0 %v643
        %715 = vmatpush.msra.mxu0 %v642
        %716 = vmatpush.msra.mxu0 %v641
        %717 = vmatpush.msra.mxu0 %v640
        %718 = vmatpush.msra.mxu0 %v639
        %719 = vmatpush.msra.mxu0 %v638
        %720 = vmatpush.msra.mxu0 %v637
        %721 = vmatmul.f32.gmra.mxu0 %v618
        %v722 = vpop.f32.mrf.mxu0
        %v723 = vadd.f32 %v703, %v722
        %724 = vdwg.mxu0
        %725 = vmatpush.msra.mxu0 %v668
        %726 = vmatpush.msra.mxu0 %v667
        %727 = vmatpush.msra.mxu0 %v666
        %728 = vmatpush.msra.mxu0 %v665
        %729 = vmatpush.msra.mxu0 %v664
        %730 = vmatpush.msra.mxu0 %v663
        %731 = vmatpush.msra.mxu0 %v662
        %732 = vmatpush.msra.mxu0 %v661
        %733 = vmatpush.msra.mxu0 %v660
        %734 = vmatpush.msra.mxu0 %v659
        %735 = vmatpush.msra.mxu0 %v658
        %736 = vmatpush.msra.mxu0 %v657
        %737 = vmatpush.msra.mxu0 %v656
        %738 = vmatpush.msra.mxu0 %v655
        %739 = vmatpush.msra.mxu0 %v654
        %740 = vmatpush.msra.mxu0 %v653
        %741 = vmatmul.f32.gmra.mxu0 %v619
        %v742 = vpop.f32.mrf.mxu0
        %v743 = vadd.f32 %v723, %v742
        %744 = vdwg.mxu0
        %745 = vmatpush.msra.mxu0 %v684
        %746 = vmatpush.msra.mxu0 %v683
        %747 = vmatpush.msra.mxu0 %v682
        %748 = vmatpush.msra.mxu0 %v681
        %749 = vmatpush.msra.mxu0 %v680
        %750 = vmatpush.msra.mxu0 %v679
        %751 = vmatpush.msra.mxu0 %v678
        %752 = vmatpush.msra.mxu0 %v677
        %753 = vmatpush.msra.mxu0 %v676
        %754 = vmatpush.msra.mxu0 %v675
        %755 = vmatpush.msra.mxu0 %v674
        %756 = vmatpush.msra.mxu0 %v673
        %757 = vmatpush.msra.mxu0 %v672
        %758 = vmatpush.msra.mxu0 %v671
        %759 = vmatpush.msra.mxu0 %v670
        %760 = vmatpush.msra.mxu0 %v669
        %761 = vmatmul.f32.gmra.mxu0 %v620
        %v762 = vpop.f32.mrf.mxu0
        %v763 = vadd.f32 %v743, %v762
        %764 = vdwg.mxu0
        %765 = vst [vmem:[%s295] sm:$0xff] %v763
        %s766 = sand.u32 %s148, 1
        %s767 = scalar_lea.sflag [#allocation7], %s766
        %s768 = sand.u32 %s148, 1
        %s769 = smul.addr %s768, 8
        %s770 = scalar_lea.vmem [#allocation13], %s769
        // Predicated region
        $region57: #{tpu_custom_call.1} parent=35 // pred_check
          %p771 = pneg %p158
        $region58: #{tpu_custom_call.1} parent=35 // pred_check_branch
          %773 = sbr.rel (%p771) target = $region60
        $region59: #{tpu_custom_call.1} parent=35 // pred_region
          %775 = vsyncadd %s767, 0
          %s776 = sadd.s32 %s37, %s36
          %s777 = smul.addr %s776, 8
          %s778 = scalar_lea.hbm %s5, %s777
          %s780 = sshll.u32 %s770, 4
          %s781 = int_to_ptr.vmem [resolvable:$true] %s780
          %s782 = sshll.u32 %s778, 4
          %s783 = int_to_ptr.hbm [resolvable:$true] %s782
          %785 = dma.vmem_to_hbm [thread:$0]  %s781, 128, %s783, %s767
        $region60: #{tpu_custom_call.1} parent=35 // pred_fallthru
          _
      $region36: #{tpu_custom_call.1} parent=5 // pred_fallthru
        _
      %p786 = scmp.le.s32.totalorder 2, %s27
      // Predicated region
      $region61: #{tpu_custom_call.1} parent=5 // pred_check
        %p787 = pneg %p786
      $region62: #{tpu_custom_call.1} parent=5 // pred_check_branch
        %789 = sbr.rel (%p787) target = $region64
      $region63: #{tpu_custom_call.1} parent=5 // pred_region
        %s790 = ssub.s32 %s27, 2
        // Predicated region
        $region65: #{tpu_custom_call.1} parent=63 // pred_check
          %p791 = pneg %p164
        $region66: #{tpu_custom_call.1} parent=63 // pred_check_branch
          %793 = sbr.rel (%p791) target = $region68
        $region67: #{tpu_custom_call.1} parent=63 // pred_region
          %s794 = sand.u32 %s149, 1
          %s795 = scalar_lea.sflag [#allocation7], %s794
          %s796 = sand.u32 %s149, 1
          %s797 = smul.addr %s796, 8
          %s798 = scalar_lea.vmem [#allocation13], %s797
          %800 = dma.done %s795, 128
        $region68: #{tpu_custom_call.1} parent=63 // pred_fallthru
          _
      $region64: #{tpu_custom_call.1} parent=5 // pred_fallthru
        _
    $region6: #{tpu_custom_call.1} parent=1 // loop_footer
      %s31 = sadd.s32 1, %s27
    $region7: #{tpu_custom_call.1} parent=1 // loop_footer_branch
      %26 = sbr.rel target = $region3
    $region8: #{tpu_custom_call.1} parent=1 // loop_exit
      _
    %801 = vsyncpa [#allocation6], 1
    %s802 = scalar_lea.sflag [#allocation6], 1
    %803 = vsyncpa %s802, 1
    %804 = vsyncpa [#allocation9], 1
    %805 = vsyncpa [#allocation12], 1
    %806 = vsyncpa [#allocation7], 1
    %s807 = scalar_lea.sflag [#allocation7], 1
    %808 = vsyncpa %s807, 1

</llo_original>
